<compile_context>
chip_gen: v6e
topology: v6e:2x2x1
jax: 0.10.0
libtpu: 0.0.40
codegen_flags: <defaults>
</compile_context>

<pallas_src>
import jax
import jax.numpy as jnp
import numpy as np
from jax.experimental import pallas as pl
from jax.experimental.pallas import tpu as pltpu


# ----------------------------- fused forward pass -----------------------------

def transpose_conv_block_forward(x_nchw, target_shape, p, ksize=3, stride=(2, 2)):
    """Fused forward of transpose_conv_block.  Returns (N, O, 2H, 2W) cropped to target_shape."""
    eps = 1e-5
    N, C, H, W = x_nchw.shape
    O = p['w1'].shape[0]
    k = ksize
    assert k == 3 and tuple(stride) == (2, 2), \
        "optimized phase-decomposed path supports ksize=3, stride=(2,2)"

    f32 = jnp.float32
    HW = H * W
    MARGIN = ((W + 2 + 127) // 128) * 128     # lane-aligned zero margin >= W+1 for shifted windows
    SW = HW + 2 * MARGIN                      # scratch row width

    # ---- BatchNorm (eval) affines ----
    s1 = (p['gamma1'] / jnp.sqrt(p['var1'] + eps)).astype(f32)
    t1 = (p['beta1'] - p['mean1'] * s1).astype(f32)
    s2 = (p['gamma2'] / jnp.sqrt(p['var2'] + eps)).astype(f32)
    t2 = (p['beta2'] - p['mean2'] * s2).astype(f32)

    # ---- conv1 taps: (9, O, C); tap t = ki*3 + kj reads h1[h + ki - 1, w + kj - 1] ----
    w1taps = jnp.stack([p['w1'][:, :, ki, kj] for ki in range(3) for kj in range(3)],
                       axis=0).astype(f32)

    # ---- ConvTranspose2d(k=3, stride=2) stride-phase weights: (16, O, O) ----
    # out(2a+ph, 2b+pw) = sum_{dh,dw in {0,1}} w2[:, :, ph+2(1-dh), pw+2(1-dw)].T @ h2[a+dh-1, b+dw-1]
    #                     (+ phase (0,0) only: w_skip.T @ x[a,b]) + (b2 + b_skip)
    zeroOO = jnp.zeros((O, O), f32)
    w2blocks = []
    for ph in range(2):
        for pw in range(2):
            for dh in range(2):
                for dw in range(2):
                    kth, ktw = ph + 2 * (1 - dh), pw + 2 * (1 - dw)
                    w2blocks.append(p['w2'][:, :, kth, ktw].T.astype(f32)
                                    if (kth < k and ktw < k) else zeroOO)
    w2p = jnp.stack(w2blocks, axis=0)                      # (16, O, O)
    ws = p['w_skip'][:, :, 0, 0].T.astype(f32)             # (O, C)
    b2s = (p['b2'] + p['b_skip']).astype(f32)

    # ---- tap validity masks (9, HW): tap (di,dj) valid iff 0<=h+di<H and 0<=w+dj<W ----
    hh = jnp.arange(H)
    ww = jnp.arange(W)
    mrows = []
    for di in (-1, 0, 1):
        for dj in (-1, 0, 1):
            mh = ((hh + di) >= 0) & ((hh + di) < H)
            mw = ((ww + dj) >= 0) & ((ww + dj) < W)
            mrows.append((mh[:, None] & mw[None, :]).reshape(HW))
    masks = jnp.stack(mrows, axis=0).astype(f32)           # (9, HW)

    x3 = x_nchw.reshape(N, C, HW).astype(f32)
    col = lambda v: v.reshape(-1, 1).astype(f32)

    def kernel(x_ref, m_ref, w1_ref, b1_ref, s1_ref, t1_ref, s2_ref, t2_ref,
               w2p_ref, ws_ref, b2s_ref, out_ref, scr1, scr2):
        x = x_ref[0]                                                     # (C, HW)

        # bn1(relu(x)); SAME-pad halo handled per tap via masks (kept exactly 0).
        h1 = jnp.maximum(x, 0.0) * s1_ref[...] + t1_ref[...]             # (C, HW)
        scr1[...] = jnp.zeros((C, SW), f32)
        scr1[:, MARGIN:MARGIN + HW] = h1

        # conv1: 3x3 / stride 1 / SAME as 9 shifted-window matmuls accumulated in f32.
        acc1 = jnp.zeros((O, HW), f32)
        for t in range(9):
            di, dj = t // 3 - 1, t % 3 - 1
            off = di * W + dj
            slab = scr1[:, MARGIN + off:MARGIN + off + HW] * m_ref[t:t + 1, :]
            acc1 = acc1 + jnp.dot(w1_ref[t], slab, preferred_element_type=f32)

        # +b1 -> relu -> bn2 affine (dropout2 = eval identity).
        h2 = jnp.maximum(acc1 + b1_ref[...], 0.0) * s2_ref[...] + t2_ref[...]   # (O, HW)
        scr2[...] = jnp.zeros((O, SW), f32)
        scr2[:, MARGIN:MARGIN + HW] = h2

        # ConvTranspose2d stride-phase decomposition + fused 1x1 conv_skip + (b2 + b_skip).
        phase_rows = []
        for ph in range(2):
            for pw in range(2):
                pidx = ph * 2 + pw
                acc = jnp.zeros((O, HW), f32)
                for dh in range(2):
                    for dw in range(2):
                        kth, ktw = ph + 2 * (1 - dh), pw + 2 * (1 - dw)
                        if kth >= 3 or ktw >= 3:
                            continue                                     # statically-zero tap
                        di, dj = dh - 1, dw - 1
                        off = di * W + dj
                        mt = (di + 1) * 3 + (dj + 1)
                        slab = scr2[:, MARGIN + off:MARGIN + off + HW] * m_ref[mt:mt + 1, :]
                        acc = acc + jnp.dot(w2p_ref[pidx * 4 + dh * 2 + dw], slab,
                                            preferred_element_type=f32)
                if pidx == 0:
                    acc = acc + jnp.dot(ws_ref[...], x, preferred_element_type=f32)
                phase_rows.append(acc + b2s_ref[...])
        out_ref[0] = jnp.concatenate(phase_rows, axis=0)                 # (4*O, HW) dense store

    vec = lambda R: pl.BlockSpec((R, 1), lambda n: (0, 0))

    # Explicit VMEM budget (review): per-step blocks + intermediates with headroom, kept below
    # v7x's 64 MiB physical VMEM.
    est = 4 * (2 * (C + 4 * O + 9) * HW + (C + O) * SW + 8 * (C + O) * HW
               + 16 * O * O + 9 * O * C)
    vmem_limit = int(min(48 * 1024 * 1024, max(32 * 1024 * 1024, 2 * est)))

    out = pl.pallas_call(
        kernel,
        out_shape=jax.ShapeDtypeStruct((N, 4 * O, HW), f32),
        grid_spec=pltpu.PrefetchScalarGridSpec(
            num_scalar_prefetch=0,
            grid=(N,),
            in_specs=[
                pl.BlockSpec((1, C, HW), lambda n: (n, 0, 0)),      # x (per image)
                pl.BlockSpec((9, HW), lambda n: (0, 0)),            # tap validity masks (resident)
                pl.BlockSpec((9, O, C), lambda n: (0, 0, 0)),       # conv1 taps
                vec(O), vec(C), vec(C), vec(O), vec(O),             # b1, s1, t1, s2, t2
                pl.BlockSpec((16, O, O), lambda n: (0, 0, 0)),      # conv2 phase/window weights
                pl.BlockSpec((O, C), lambda n: (0, 0)),             # conv_skip weight
                vec(O),                                             # b2 + b_skip
            ],
            out_specs=pl.BlockSpec((1, 4 * O, HW), lambda n: (n, 0, 0)),
            scratch_shapes=[pltpu.VMEM((C, SW), f32),               # zero-margined h1
                            pltpu.VMEM((O, SW), f32)],              # zero-margined h2
        ),
        compiler_params=pltpu.CompilerParams(
            dimension_semantics=("parallel",),
            vmem_limit_bytes=vmem_limit,
        ),
    )(x3, masks, w1taps, col(p['b1']), col(s1), col(t1), col(s2), col(t2), w2p, ws, col(b2s))

    # Phase interleave back to NCHW (single XLA transpose; this realises transpose_padding_same's
    # crop), then the optional -1 crops against the requested output `shape`.
    # TODO(synk): stride-2 lane interleave left to XLA (no safe in-kernel upsample-by-2 shuffle).
    y = out.reshape(N, 2, 2, O, H, W)
    y = jnp.transpose(y, (0, 3, 4, 1, 5, 2)).reshape(N, O, 2 * H, 2 * W)
    if y.shape[2] > target_shape[2]:
        y = y[:, :, :-1, :]
    if y.shape[3] > target_shape[3]:
        y = y[:, :, :, :-1]
    return y


# ----------------------------- pure-JAX reference (correctness check) -----------------------------

def _same_pad_amount(n, k, s):
    return max(k - s, 0) if n % s == 0 else max(k - n % s, 0)


def ref_forward(x, target_shape, p, k=3, stride=(2, 2)):
    eps = 1e-5
    N, C, H, W = x.shape
    s1 = p['gamma1'] / jnp.sqrt(p['var1'] + eps)
    sh1 = p['beta1'] - p['mean1'] * s1
    h = jnp.maximum(x, 0.0) * s1[None, :, None, None] + sh1[None, :, None, None]
    ph, pw = _same_pad_amount(H, k, 1), _same_pad_amount(W, k, 1)
    h = jnp.pad(h, ((0, 0), (0, 0), (ph // 2, ph - ph // 2), (pw // 2, pw - pw // 2)))
    y1 = jax.lax.conv_general_dilated(h, p['w1'], (1, 1), 'VALID',
                                      dimension_numbers=('NCHW', 'OIHW', 'NCHW'))
    y1 = y1 + p['b1'][None, :, None, None]
    s2 = p['gamma2'] / jnp.sqrt(p['var2'] + eps)
    sh2 = p['beta2'] - p['mean2'] * s2
    h2 = jnp.maximum(y1, 0.0) * s2[None, :, None, None] + sh2[None, :, None, None]
    Hc, Wc = h2.shape[2], h2.shape[3]
    w2t = jnp.flip(jnp.transpose(p['w2'], (1, 0, 2, 3)), axis=(2, 3))
    y2 = jax.lax.conv_general_dilated(h2, w2t, (1, 1), [(k - 1, k - 1), (k - 1, k - 1)],
                                      lhs_dilation=stride,
                                      dimension_numbers=('NCHW', 'OIHW', 'NCHW'))
    y2 = y2 + p['b2'][None, :, None, None]
    tgt = (Hc * stride[0], Wc * stride[1])
    out = (y2.shape[2], y2.shape[3])
    if out != tgt:
        rm0, rm1 = out[0] - tgt[0], out[1] - tgt[1]
        l0, r0 = rm0 // 2, rm0 // 2 + rm0 % 2
        l1, r1 = rm1 // 2, rm1 // 2 + rm1 % 2
        y2 = y2[:, :, l0:out[0] - r0, l1:out[1] - r1]
    if y2.shape[2] > target_shape[2]:
        y2 = y2[:, :, :-1, :]
    if y2.shape[3] > target_shape[3]:
        y2 = y2[:, :, :, :-1]
    th, tw = y2.shape[2], y2.shape[3]
    wskt = jnp.transpose(p['w_skip'], (1, 0, 2, 3))
    sk = jax.lax.conv_general_dilated(x, wskt, (1, 1), [(0, 0), (0, 0)],
                                      lhs_dilation=stride,
                                      dimension_numbers=('NCHW', 'OIHW', 'NCHW'))
    sk = jnp.pad(sk, ((0, 0), (0, 0), (0, th - sk.shape[2]), (0, tw - sk.shape[3])))
    sk = sk + p['b_skip'][None, :, None, None]
    return y2 + sk


# ----------------------------- main -----------------------------

if __name__ == "__main__":
    key = jax.random.PRNGKey(0)
    N, C, O, H, W, k = 2, 4, 8, 16, 16, 3
    stride = (2, 2)
    keys = jax.random.split(key, 16)
    params = {
        'w1': 0.1 * jax.random.normal(keys[0], (O, C, k, k), jnp.float32),
        'b1': 0.1 * jax.random.normal(keys[1], (O,), jnp.float32),
        'gamma1': 1.0 + 0.1 * jax.random.normal(keys[2], (C,), jnp.float32),
        'beta1': 0.1 * jax.random.normal(keys[3], (C,), jnp.float32),
        'mean1': 0.1 * jax.random.normal(keys[4], (C,), jnp.float32),
        'var1': jax.random.uniform(keys[5], (C,), jnp.float32, 0.5, 1.5),
        'w2': 0.1 * jax.random.normal(keys[6], (O, O, k, k), jnp.float32),
        'b2': 0.1 * jax.random.normal(keys[7], (O,), jnp.float32),
        'gamma2': 1.0 + 0.1 * jax.random.normal(keys[8], (O,), jnp.float32),
        'beta2': 0.1 * jax.random.normal(keys[9], (O,), jnp.float32),
        'mean2': 0.1 * jax.random.normal(keys[10], (O,), jnp.float32),
        'var2': jax.random.uniform(keys[11], (O,), jnp.float32, 0.5, 1.5),
        'w_skip': 0.1 * jax.random.normal(keys[12], (C, O, 1, 1), jnp.float32),
        'b_skip': 0.1 * jax.random.normal(keys[13], (O,), jnp.float32),
    }
    x = jax.random.normal(keys[14], (N, C, H, W), jnp.float32)
    target_shape = (N, O, H * stride[0], W * stride[1])

    out = transpose_conv_block_forward(x, target_shape, params, ksize=k, stride=stride)
    out = jax.block_until_ready(out)

    ref = ref_forward(x, target_shape, params, k=k, stride=stride)
    assert out.shape == tuple(target_shape), (out.shape, target_shape)
    np.testing.assert_allclose(np.asarray(out), np.asarray(ref), rtol=1e-4, atol=1e-4)

    print("KERNEL_OK")
</pallas_src>

<mosaic_0001>
module attributes {stable_mosaic.version = 11 : i64} {
  func.func @kernel(%arg0: i32, %arg1: memref<1x4x256xf32, #tpu.memory_space<vmem>>, %arg2: memref<9x256xf32, #tpu.memory_space<vmem>>, %arg3: memref<9x8x4xf32, #tpu.memory_space<vmem>>, %arg4: memref<8x1xf32, #tpu.memory_space<vmem>>, %arg5: memref<4x1xf32, #tpu.memory_space<vmem>>, %arg6: memref<4x1xf32, #tpu.memory_space<vmem>>, %arg7: memref<8x1xf32, #tpu.memory_space<vmem>>, %arg8: memref<8x1xf32, #tpu.memory_space<vmem>>, %arg9: memref<16x8x8xf32, #tpu.memory_space<vmem>>, %arg10: memref<8x4xf32, #tpu.memory_space<vmem>>, %arg11: memref<8x1xf32, #tpu.memory_space<vmem>>, %arg12: memref<1x32x256xf32, #tpu.memory_space<vmem>>, %arg13: memref<4x512xf32, #tpu.memory_space<vmem>>, %arg14: memref<8x512xf32, #tpu.memory_space<vmem>>) attributes {dimension_semantics = [#tpu.dimension_semantics<parallel>], iteration_bounds = array<i64: 2>, scalar_prefetch = 0 : i64, scratch_operands = 2 : i64, tpu.core_type = #tpu.core_type<tc>, window_params = [{transform_indices = @transform_0, window_bounds = array<i64: 1, 4, 256>}, {pipeline_mode = #tpu.pipeline_mode<synchronous>, transform_indices = @transform_1, window_bounds = array<i64: 9, 256>}, {pipeline_mode = #tpu.pipeline_mode<synchronous>, transform_indices = @transform_2, window_bounds = array<i64: 9, 8, 4>}, {pipeline_mode = #tpu.pipeline_mode<synchronous>, transform_indices = @transform_3, window_bounds = array<i64: 8, 1>}, {pipeline_mode = #tpu.pipeline_mode<synchronous>, transform_indices = @transform_4, window_bounds = array<i64: 4, 1>}, {pipeline_mode = #tpu.pipeline_mode<synchronous>, transform_indices = @transform_5, window_bounds = array<i64: 4, 1>}, {pipeline_mode = #tpu.pipeline_mode<synchronous>, transform_indices = @transform_6, window_bounds = array<i64: 8, 1>}, {pipeline_mode = #tpu.pipeline_mode<synchronous>, transform_indices = @transform_7, window_bounds = array<i64: 8, 1>}, {pipeline_mode = #tpu.pipeline_mode<synchronous>, transform_indices = @transform_8, window_bounds = array<i64: 16, 8, 8>}, {pipeline_mode = #tpu.pipeline_mode<synchronous>, transform_indices = @transform_9, window_bounds = array<i64: 8, 4>}, {pipeline_mode = #tpu.pipeline_mode<synchronous>, transform_indices = @transform_10, window_bounds = array<i64: 8, 1>}, {transform_indices = @transform_11, window_bounds = array<i64: 1, 32, 256>}]} {
    %c0 = arith.constant 0 : index
    %c0_0 = arith.constant 0 : index
    %c0_1 = arith.constant 0 : index
    %0 = vector.load %arg1[%c0, %c0_0, %c0_1] : memref<1x4x256xf32, #tpu.memory_space<vmem>>, vector<1x4x256xf32>
    %1 = vector.shape_cast %0 : vector<1x4x256xf32> to vector<4x256xf32>
    %cst = arith.constant 0.000000e+00 : f32
    %2 = vector.broadcast %cst : f32 to vector<4x256xf32>
    %3 = arith.maximumf %1, %2 : vector<4x256xf32>
    %c0_2 = arith.constant 0 : index
    %c0_3 = arith.constant 0 : index
    %4 = vector.load %arg5[%c0_2, %c0_3] : memref<4x1xf32, #tpu.memory_space<vmem>>, vector<4x1xf32>
    %5 = vector.broadcast %4 : vector<4x1xf32> to vector<4x256xf32>
    %6 = arith.mulf %3, %5 : vector<4x256xf32>
    %c0_4 = arith.constant 0 : index
    %c0_5 = arith.constant 0 : index
    %7 = vector.load %arg6[%c0_4, %c0_5] : memref<4x1xf32, #tpu.memory_space<vmem>>, vector<4x1xf32>
    %8 = vector.broadcast %7 : vector<4x1xf32> to vector<4x256xf32>
    %9 = arith.addf %6, %8 : vector<4x256xf32>
    %cst_6 = arith.constant 0.000000e+00 : f32
    %10 = vector.broadcast %cst_6 : f32 to vector<4x512xf32>
    %c0_7 = arith.constant 0 : index
    %c0_8 = arith.constant 0 : index
    %11 = vector.load %arg13[%c0_7, %c0_8] : memref<4x512xf32, #tpu.memory_space<vmem>>, vector<4x512xf32>
    tpu.vector_store %arg13[%c0_7, %c0_8], %10 {strides = array<i32>} : memref<4x512xf32, #tpu.memory_space<vmem>>, vector<4x512xf32>,
    %c0_9 = arith.constant 0 : index
    %c128 = arith.constant 128 : index
    %12 = vector.load %arg13[%c0_9, %c128] : memref<4x512xf32, #tpu.memory_space<vmem>>, vector<4x256xf32>
    tpu.vector_store %arg13[%c0_9, %c128], %9 {strides = array<i32>} : memref<4x512xf32, #tpu.memory_space<vmem>>, vector<4x256xf32>,
    %cst_10 = arith.constant 0.000000e+00 : f32
    %13 = vector.broadcast %cst_10 : f32 to vector<8x256xf32>
    %c0_11 = arith.constant 0 : index
    %c111 = arith.constant 111 : index
    %14 = vector.load %arg13[%c0_11, %c111] : memref<4x512xf32, #tpu.memory_space<vmem>>, vector<4x256xf32>
    %c0_12 = arith.constant 0 : index
    %c0_13 = arith.constant 0 : index
    %15 = vector.load %arg2[%c0_12, %c0_13] : memref<9x256xf32, #tpu.memory_space<vmem>>, vector<1x256xf32>
    %16 = vector.broadcast %15 : vector<1x256xf32> to vector<4x256xf32>
    %17 = arith.mulf %14, %16 : vector<4x256xf32>
    %c0_14 = arith.constant 0 : index
    %c0_15 = arith.constant 0 : index
    %c0_16 = arith.constant 0 : index
    %18 = vector.load %arg3[%c0_14, %c0_15, %c0_16] : memref<9x8x4xf32, #tpu.memory_space<vmem>>, vector<1x8x4xf32>
    %19 = vector.shape_cast %18 : vector<1x8x4xf32> to vector<8x4xf32>
    %cst_17 = arith.constant dense<0.000000e+00> : vector<8x256xf32>
    %20 = tpu.matmul %19, %17, %cst_17 {dimension_numbers = #tpu.dot_dimension_numbers<[1], [0], [0], [1], [0, 0, 1, 1], [], []>} : vector<8x4xf32>, vector<4x256xf32>, vector<8x256xf32> -> vector<8x256xf32>
    %21 = arith.addf %13, %20 : vector<8x256xf32>
    %c0_18 = arith.constant 0 : index
    %c112 = arith.constant 112 : index
    %22 = vector.load %arg13[%c0_18, %c112] : memref<4x512xf32, #tpu.memory_space<vmem>>, vector<4x256xf32>
    %c1 = arith.constant 1 : index
    %c0_19 = arith.constant 0 : index
    %23 = vector.load %arg2[%c1, %c0_19] : memref<9x256xf32, #tpu.memory_space<vmem>>, vector<1x256xf32>
    %24 = vector.broadcast %23 : vector<1x256xf32> to vector<4x256xf32>
    %25 = arith.mulf %22, %24 : vector<4x256xf32>
    %c1_20 = arith.constant 1 : index
    %c0_21 = arith.constant 0 : index
    %c0_22 = arith.constant 0 : index
    %26 = vector.load %arg3[%c1_20, %c0_21, %c0_22] : memref<9x8x4xf32, #tpu.memory_space<vmem>>, vector<1x8x4xf32>
    %27 = vector.shape_cast %26 : vector<1x8x4xf32> to vector<8x4xf32>
    %cst_23 = arith.constant dense<0.000000e+00> : vector<8x256xf32>
    %28 = tpu.matmul %27, %25, %cst_23 {dimension_numbers = #tpu.dot_dimension_numbers<[1], [0], [0], [1], [0, 0, 1, 1], [], []>} : vector<8x4xf32>, vector<4x256xf32>, vector<8x256xf32> -> vector<8x256xf32>
    %29 = arith.addf %21, %28 : vector<8x256xf32>
    %c0_24 = arith.constant 0 : index
    %c113 = arith.constant 113 : index
    %30 = vector.load %arg13[%c0_24, %c113] : memref<4x512xf32, #tpu.memory_space<vmem>>, vector<4x256xf32>
    %c2 = arith.constant 2 : index
    %c0_25 = arith.constant 0 : index
    %31 = vector.load %arg2[%c2, %c0_25] : memref<9x256xf32, #tpu.memory_space<vmem>>, vector<1x256xf32>
    %32 = vector.broadcast %31 : vector<1x256xf32> to vector<4x256xf32>
    %33 = arith.mulf %30, %32 : vector<4x256xf32>
    %c2_26 = arith.constant 2 : index
    %c0_27 = arith.constant 0 : index
    %c0_28 = arith.constant 0 : index
    %34 = vector.load %arg3[%c2_26, %c0_27, %c0_28] : memref<9x8x4xf32, #tpu.memory_space<vmem>>, vector<1x8x4xf32>
    %35 = vector.shape_cast %34 : vector<1x8x4xf32> to vector<8x4xf32>
    %cst_29 = arith.constant dense<0.000000e+00> : vector<8x256xf32>
    %36 = tpu.matmul %35, %33, %cst_29 {dimension_numbers = #tpu.dot_dimension_numbers<[1], [0], [0], [1], [0, 0, 1, 1], [], []>} : vector<8x4xf32>, vector<4x256xf32>, vector<8x256xf32> -> vector<8x256xf32>
    %37 = arith.addf %29, %36 : vector<8x256xf32>
    %c0_30 = arith.constant 0 : index
    %c127 = arith.constant 127 : index
    %38 = vector.load %arg13[%c0_30, %c127] : memref<4x512xf32, #tpu.memory_space<vmem>>, vector<4x256xf32>
    %c3 = arith.constant 3 : index
    %c0_31 = arith.constant 0 : index
    %39 = vector.load %arg2[%c3, %c0_31] : memref<9x256xf32, #tpu.memory_space<vmem>>, vector<1x256xf32>
    %40 = vector.broadcast %39 : vector<1x256xf32> to vector<4x256xf32>
    %41 = arith.mulf %38, %40 : vector<4x256xf32>
    %c3_32 = arith.constant 3 : index
    %c0_33 = arith.constant 0 : index
    %c0_34 = arith.constant 0 : index
    %42 = vector.load %arg3[%c3_32, %c0_33, %c0_34] : memref<9x8x4xf32, #tpu.memory_space<vmem>>, vector<1x8x4xf32>
    %43 = vector.shape_cast %42 : vector<1x8x4xf32> to vector<8x4xf32>
    %cst_35 = arith.constant dense<0.000000e+00> : vector<8x256xf32>
    %44 = tpu.matmul %43, %41, %cst_35 {dimension_numbers = #tpu.dot_dimension_numbers<[1], [0], [0], [1], [0, 0, 1, 1], [], []>} : vector<8x4xf32>, vector<4x256xf32>, vector<8x256xf32> -> vector<8x256xf32>
    %45 = arith.addf %37, %44 : vector<8x256xf32>
    %c0_36 = arith.constant 0 : index
    %c128_37 = arith.constant 128 : index
    %46 = vector.load %arg13[%c0_36, %c128_37] : memref<4x512xf32, #tpu.memory_space<vmem>>, vector<4x256xf32>
    %c4 = arith.constant 4 : index
    %c0_38 = arith.constant 0 : index
    %47 = vector.load %arg2[%c4, %c0_38] : memref<9x256xf32, #tpu.memory_space<vmem>>, vector<1x256xf32>
    %48 = vector.broadcast %47 : vector<1x256xf32> to vector<4x256xf32>
    %49 = arith.mulf %46, %48 : vector<4x256xf32>
    %c4_39 = arith.constant 4 : index
    %c0_40 = arith.constant 0 : index
    %c0_41 = arith.constant 0 : index
    %50 = vector.load %arg3[%c4_39, %c0_40, %c0_41] : memref<9x8x4xf32, #tpu.memory_space<vmem>>, vector<1x8x4xf32>
    %51 = vector.shape_cast %50 : vector<1x8x4xf32> to vector<8x4xf32>
    %cst_42 = arith.constant dense<0.000000e+00> : vector<8x256xf32>
    %52 = tpu.matmul %51, %49, %cst_42 {dimension_numbers = #tpu.dot_dimension_numbers<[1], [0], [0], [1], [0, 0, 1, 1], [], []>} : vector<8x4xf32>, vector<4x256xf32>, vector<8x256xf32> -> vector<8x256xf32>
    %53 = arith.addf %45, %52 : vector<8x256xf32>
    %c0_43 = arith.constant 0 : index
    %c129 = arith.constant 129 : index
    %54 = vector.load %arg13[%c0_43, %c129] : memref<4x512xf32, #tpu.memory_space<vmem>>, vector<4x256xf32>
    %c5 = arith.constant 5 : index
    %c0_44 = arith.constant 0 : index
    %55 = vector.load %arg2[%c5, %c0_44] : memref<9x256xf32, #tpu.memory_space<vmem>>, vector<1x256xf32>
    %56 = vector.broadcast %55 : vector<1x256xf32> to vector<4x256xf32>
    %57 = arith.mulf %54, %56 : vector<4x256xf32>
    %c5_45 = arith.constant 5 : index
    %c0_46 = arith.constant 0 : index
    %c0_47 = arith.constant 0 : index
    %58 = vector.load %arg3[%c5_45, %c0_46, %c0_47] : memref<9x8x4xf32, #tpu.memory_space<vmem>>, vector<1x8x4xf32>
    %59 = vector.shape_cast %58 : vector<1x8x4xf32> to vector<8x4xf32>
    %cst_48 = arith.constant dense<0.000000e+00> : vector<8x256xf32>
    %60 = tpu.matmul %59, %57, %cst_48 {dimension_numbers = #tpu.dot_dimension_numbers<[1], [0], [0], [1], [0, 0, 1, 1], [], []>} : vector<8x4xf32>, vector<4x256xf32>, vector<8x256xf32> -> vector<8x256xf32>
    %61 = arith.addf %53, %60 : vector<8x256xf32>
    %c0_49 = arith.constant 0 : index
    %c143 = arith.constant 143 : index
    %62 = vector.load %arg13[%c0_49, %c143] : memref<4x512xf32, #tpu.memory_space<vmem>>, vector<4x256xf32>
    %c6 = arith.constant 6 : index
    %c0_50 = arith.constant 0 : index
    %63 = vector.load %arg2[%c6, %c0_50] : memref<9x256xf32, #tpu.memory_space<vmem>>, vector<1x256xf32>
    %64 = vector.broadcast %63 : vector<1x256xf32> to vector<4x256xf32>
    %65 = arith.mulf %62, %64 : vector<4x256xf32>
    %c6_51 = arith.constant 6 : index
    %c0_52 = arith.constant 0 : index
    %c0_53 = arith.constant 0 : index
    %66 = vector.load %arg3[%c6_51, %c0_52, %c0_53] : memref<9x8x4xf32, #tpu.memory_space<vmem>>, vector<1x8x4xf32>
    %67 = vector.shape_cast %66 : vector<1x8x4xf32> to vector<8x4xf32>
    %cst_54 = arith.constant dense<0.000000e+00> : vector<8x256xf32>
    %68 = tpu.matmul %67, %65, %cst_54 {dimension_numbers = #tpu.dot_dimension_numbers<[1], [0], [0], [1], [0, 0, 1, 1], [], []>} : vector<8x4xf32>, vector<4x256xf32>, vector<8x256xf32> -> vector<8x256xf32>
    %69 = arith.addf %61, %68 : vector<8x256xf32>
    %c0_55 = arith.constant 0 : index
    %c144 = arith.constant 144 : index
    %70 = vector.load %arg13[%c0_55, %c144] : memref<4x512xf32, #tpu.memory_space<vmem>>, vector<4x256xf32>
    %c7 = arith.constant 7 : index
    %c0_56 = arith.constant 0 : index
    %71 = vector.load %arg2[%c7, %c0_56] : memref<9x256xf32, #tpu.memory_space<vmem>>, vector<1x256xf32>
    %72 = vector.broadcast %71 : vector<1x256xf32> to vector<4x256xf32>
    %73 = arith.mulf %70, %72 : vector<4x256xf32>
    %c7_57 = arith.constant 7 : index
    %c0_58 = arith.constant 0 : index
    %c0_59 = arith.constant 0 : index
    %74 = vector.load %arg3[%c7_57, %c0_58, %c0_59] : memref<9x8x4xf32, #tpu.memory_space<vmem>>, vector<1x8x4xf32>
    %75 = vector.shape_cast %74 : vector<1x8x4xf32> to vector<8x4xf32>
    %cst_60 = arith.constant dense<0.000000e+00> : vector<8x256xf32>
    %76 = tpu.matmul %75, %73, %cst_60 {dimension_numbers = #tpu.dot_dimension_numbers<[1], [0], [0], [1], [0, 0, 1, 1], [], []>} : vector<8x4xf32>, vector<4x256xf32>, vector<8x256xf32> -> vector<8x256xf32>
    %77 = arith.addf %69, %76 : vector<8x256xf32>
    %c0_61 = arith.constant 0 : index
    %c145 = arith.constant 145 : index
    %78 = vector.load %arg13[%c0_61, %c145] : memref<4x512xf32, #tpu.memory_space<vmem>>, vector<4x256xf32>
    %c8 = arith.constant 8 : index
    %c0_62 = arith.constant 0 : index
    %79 = vector.load %arg2[%c8, %c0_62] : memref<9x256xf32, #tpu.memory_space<vmem>>, vector<1x256xf32>
    %80 = vector.broadcast %79 : vector<1x256xf32> to vector<4x256xf32>
    %81 = arith.mulf %78, %80 : vector<4x256xf32>
    %c8_63 = arith.constant 8 : index
    %c0_64 = arith.constant 0 : index
    %c0_65 = arith.constant 0 : index
    %82 = vector.load %arg3[%c8_63, %c0_64, %c0_65] : memref<9x8x4xf32, #tpu.memory_space<vmem>>, vector<1x8x4xf32>
    %83 = vector.shape_cast %82 : vector<1x8x4xf32> to vector<8x4xf32>
    %cst_66 = arith.constant dense<0.000000e+00> : vector<8x256xf32>
    %84 = tpu.matmul %83, %81, %cst_66 {dimension_numbers = #tpu.dot_dimension_numbers<[1], [0], [0], [1], [0, 0, 1, 1], [], []>} : vector<8x4xf32>, vector<4x256xf32>, vector<8x256xf32> -> vector<8x256xf32>
    %85 = arith.addf %77, %84 : vector<8x256xf32>
    %c0_67 = arith.constant 0 : index
    %c0_68 = arith.constant 0 : index
    %86 = vector.load %arg4[%c0_67, %c0_68] : memref<8x1xf32, #tpu.memory_space<vmem>>, vector<8x1xf32>
    %87 = vector.broadcast %86 : vector<8x1xf32> to vector<8x256xf32>
    %88 = arith.addf %85, %87 : vector<8x256xf32>
    %cst_69 = arith.constant 0.000000e+00 : f32
    %89 = vector.broadcast %cst_69 : f32 to vector<8x256xf32>
    %90 = arith.maximumf %88, %89 : vector<8x256xf32>
    %c0_70 = arith.constant 0 : index
    %c0_71 = arith.constant 0 : index
    %91 = vector.load %arg7[%c0_70, %c0_71] : memref<8x1xf32, #tpu.memory_space<vmem>>, vector<8x1xf32>
    %92 = vector.broadcast %91 : vector<8x1xf32> to vector<8x256xf32>
    %93 = arith.mulf %90, %92 : vector<8x256xf32>
    %c0_72 = arith.constant 0 : index
    %c0_73 = arith.constant 0 : index
    %94 = vector.load %arg8[%c0_72, %c0_73] : memref<8x1xf32, #tpu.memory_space<vmem>>, vector<8x1xf32>
    %95 = vector.broadcast %94 : vector<8x1xf32> to vector<8x256xf32>
    %96 = arith.addf %93, %95 : vector<8x256xf32>
    %cst_74 = arith.constant 0.000000e+00 : f32
    %97 = vector.broadcast %cst_74 : f32 to vector<8x512xf32>
    %c0_75 = arith.constant 0 : index
    %c0_76 = arith.constant 0 : index
    %98 = vector.load %arg14[%c0_75, %c0_76] : memref<8x512xf32, #tpu.memory_space<vmem>>, vector<8x512xf32>
    tpu.vector_store %arg14[%c0_75, %c0_76], %97 {strides = array<i32>} : memref<8x512xf32, #tpu.memory_space<vmem>>, vector<8x512xf32>,
    %c0_77 = arith.constant 0 : index
    %c128_78 = arith.constant 128 : index
    %99 = vector.load %arg14[%c0_77, %c128_78] : memref<8x512xf32, #tpu.memory_space<vmem>>, vector<8x256xf32>
    tpu.vector_store %arg14[%c0_77, %c128_78], %96 {strides = array<i32>} : memref<8x512xf32, #tpu.memory_space<vmem>>, vector<8x256xf32>,
    %cst_79 = arith.constant 0.000000e+00 : f32
    %100 = vector.broadcast %cst_79 : f32 to vector<8x256xf32>
    %c0_80 = arith.constant 0 : index
    %c111_81 = arith.constant 111 : index
    %101 = vector.load %arg14[%c0_80, %c111_81] : memref<8x512xf32, #tpu.memory_space<vmem>>, vector<8x256xf32>
    %c0_82 = arith.constant 0 : index
    %c0_83 = arith.constant 0 : index
    %102 = vector.load %arg2[%c0_82, %c0_83] : memref<9x256xf32, #tpu.memory_space<vmem>>, vector<1x256xf32>
    %103 = vector.broadcast %102 : vector<1x256xf32> to vector<8x256xf32>
    %104 = arith.mulf %101, %103 : vector<8x256xf32>
    %c0_84 = arith.constant 0 : index
    %c0_85 = arith.constant 0 : index
    %c0_86 = arith.constant 0 : index
    %105 = vector.load %arg9[%c0_84, %c0_85, %c0_86] : memref<16x8x8xf32, #tpu.memory_space<vmem>>, vector<1x8x8xf32>
    %106 = vector.shape_cast %105 : vector<1x8x8xf32> to vector<8x8xf32>
    %cst_87 = arith.constant dense<0.000000e+00> : vector<8x256xf32>
    %107 = tpu.matmul %106, %104, %cst_87 {dimension_numbers = #tpu.dot_dimension_numbers<[1], [0], [0], [1], [0, 0, 1, 1], [], []>} : vector<8x8xf32>, vector<8x256xf32>, vector<8x256xf32> -> vector<8x256xf32>
    %108 = arith.addf %100, %107 : vector<8x256xf32>
    %c0_88 = arith.constant 0 : index
    %c112_89 = arith.constant 112 : index
    %109 = vector.load %arg14[%c0_88, %c112_89] : memref<8x512xf32, #tpu.memory_space<vmem>>, vector<8x256xf32>
    %c1_90 = arith.constant 1 : index
    %c0_91 = arith.constant 0 : index
    %110 = vector.load %arg2[%c1_90, %c0_91] : memref<9x256xf32, #tpu.memory_space<vmem>>, vector<1x256xf32>
    %111 = vector.broadcast %110 : vector<1x256xf32> to vector<8x256xf32>
    %112 = arith.mulf %109, %111 : vector<8x256xf32>
    %c1_92 = arith.constant 1 : index
    %c0_93 = arith.constant 0 : index
    %c0_94 = arith.constant 0 : index
    %113 = vector.load %arg9[%c1_92, %c0_93, %c0_94] : memref<16x8x8xf32, #tpu.memory_space<vmem>>, vector<1x8x8xf32>
    %114 = vector.shape_cast %113 : vector<1x8x8xf32> to vector<8x8xf32>
    %cst_95 = arith.constant dense<0.000000e+00> : vector<8x256xf32>
    %115 = tpu.matmul %114, %112, %cst_95 {dimension_numbers = #tpu.dot_dimension_numbers<[1], [0], [0], [1], [0, 0, 1, 1], [], []>} : vector<8x8xf32>, vector<8x256xf32>, vector<8x256xf32> -> vector<8x256xf32>
    %116 = arith.addf %108, %115 : vector<8x256xf32>
    %c0_96 = arith.constant 0 : index
    %c127_97 = arith.constant 127 : index
    %117 = vector.load %arg14[%c0_96, %c127_97] : memref<8x512xf32, #tpu.memory_space<vmem>>, vector<8x256xf32>
    %c3_98 = arith.constant 3 : index
    %c0_99 = arith.constant 0 : index
    %118 = vector.load %arg2[%c3_98, %c0_99] : memref<9x256xf32, #tpu.memory_space<vmem>>, vector<1x256xf32>
    %119 = vector.broadcast %118 : vector<1x256xf32> to vector<8x256xf32>
    %120 = arith.mulf %117, %119 : vector<8x256xf32>
    %c2_100 = arith.constant 2 : index
    %c0_101 = arith.constant 0 : index
    %c0_102 = arith.constant 0 : index
    %121 = vector.load %arg9[%c2_100, %c0_101, %c0_102] : memref<16x8x8xf32, #tpu.memory_space<vmem>>, vector<1x8x8xf32>
    %122 = vector.shape_cast %121 : vector<1x8x8xf32> to vector<8x8xf32>
    %cst_103 = arith.constant dense<0.000000e+00> : vector<8x256xf32>
    %123 = tpu.matmul %122, %120, %cst_103 {dimension_numbers = #tpu.dot_dimension_numbers<[1], [0], [0], [1], [0, 0, 1, 1], [], []>} : vector<8x8xf32>, vector<8x256xf32>, vector<8x256xf32> -> vector<8x256xf32>
    %124 = arith.addf %116, %123 : vector<8x256xf32>
    %c0_104 = arith.constant 0 : index
    %c128_105 = arith.constant 128 : index
    %125 = vector.load %arg14[%c0_104, %c128_105] : memref<8x512xf32, #tpu.memory_space<vmem>>, vector<8x256xf32>
    %c4_106 = arith.constant 4 : index
    %c0_107 = arith.constant 0 : index
    %126 = vector.load %arg2[%c4_106, %c0_107] : memref<9x256xf32, #tpu.memory_space<vmem>>, vector<1x256xf32>
    %127 = vector.broadcast %126 : vector<1x256xf32> to vector<8x256xf32>
    %128 = arith.mulf %125, %127 : vector<8x256xf32>
    %c3_108 = arith.constant 3 : index
    %c0_109 = arith.constant 0 : index
    %c0_110 = arith.constant 0 : index
    %129 = vector.load %arg9[%c3_108, %c0_109, %c0_110] : memref<16x8x8xf32, #tpu.memory_space<vmem>>, vector<1x8x8xf32>
    %130 = vector.shape_cast %129 : vector<1x8x8xf32> to vector<8x8xf32>
    %cst_111 = arith.constant dense<0.000000e+00> : vector<8x256xf32>
    %131 = tpu.matmul %130, %128, %cst_111 {dimension_numbers = #tpu.dot_dimension_numbers<[1], [0], [0], [1], [0, 0, 1, 1], [], []>} : vector<8x8xf32>, vector<8x256xf32>, vector<8x256xf32> -> vector<8x256xf32>
    %132 = arith.addf %124, %131 : vector<8x256xf32>
    %c0_112 = arith.constant 0 : index
    %c0_113 = arith.constant 0 : index
    %133 = vector.load %arg10[%c0_112, %c0_113] : memref<8x4xf32, #tpu.memory_space<vmem>>, vector<8x4xf32>
    %cst_114 = arith.constant dense<0.000000e+00> : vector<8x256xf32>
    %134 = tpu.matmul %133, %1, %cst_114 {dimension_numbers = #tpu.dot_dimension_numbers<[1], [0], [0], [1], [0, 0, 1, 1], [], []>} : vector<8x4xf32>, vector<4x256xf32>, vector<8x256xf32> -> vector<8x256xf32>
    %135 = arith.addf %132, %134 : vector<8x256xf32>
    %c0_115 = arith.constant 0 : index
    %c0_116 = arith.constant 0 : index
    %136 = vector.load %arg11[%c0_115, %c0_116] : memref<8x1xf32, #tpu.memory_space<vmem>>, vector<8x1xf32>
    %137 = vector.broadcast %136 : vector<8x1xf32> to vector<8x256xf32>
    %138 = arith.addf %135, %137 : vector<8x256xf32>
    %cst_117 = arith.constant 0.000000e+00 : f32
    %139 = vector.broadcast %cst_117 : f32 to vector<8x256xf32>
    %c0_118 = arith.constant 0 : index
    %c112_119 = arith.constant 112 : index
    %140 = vector.load %arg14[%c0_118, %c112_119] : memref<8x512xf32, #tpu.memory_space<vmem>>, vector<8x256xf32>
    %c1_120 = arith.constant 1 : index
    %c0_121 = arith.constant 0 : index
    %141 = vector.load %arg2[%c1_120, %c0_121] : memref<9x256xf32, #tpu.memory_space<vmem>>, vector<1x256xf32>
    %142 = vector.broadcast %141 : vector<1x256xf32> to vector<8x256xf32>
    %143 = arith.mulf %140, %142 : vector<8x256xf32>
    %c5_122 = arith.constant 5 : index
    %c0_123 = arith.constant 0 : index
    %c0_124 = arith.constant 0 : index
    %144 = vector.load %arg9[%c5_122, %c0_123, %c0_124] : memref<16x8x8xf32, #tpu.memory_space<vmem>>, vector<1x8x8xf32>
    %145 = vector.shape_cast %144 : vector<1x8x8xf32> to vector<8x8xf32>
    %cst_125 = arith.constant dense<0.000000e+00> : vector<8x256xf32>
    %146 = tpu.matmul %145, %143, %cst_125 {dimension_numbers = #tpu.dot_dimension_numbers<[1], [0], [0], [1], [0, 0, 1, 1], [], []>} : vector<8x8xf32>, vector<8x256xf32>, vector<8x256xf32> -> vector<8x256xf32>
    %147 = arith.addf %139, %146 : vector<8x256xf32>
    %c0_126 = arith.constant 0 : index
    %c128_127 = arith.constant 128 : index
    %148 = vector.load %arg14[%c0_126, %c128_127] : memref<8x512xf32, #tpu.memory_space<vmem>>, vector<8x256xf32>
    %c4_128 = arith.constant 4 : index
    %c0_129 = arith.constant 0 : index
    %149 = vector.load %arg2[%c4_128, %c0_129] : memref<9x256xf32, #tpu.memory_space<vmem>>, vector<1x256xf32>
    %150 = vector.broadcast %149 : vector<1x256xf32> to vector<8x256xf32>
    %151 = arith.mulf %148, %150 : vector<8x256xf32>
    %c7_130 = arith.constant 7 : index
    %c0_131 = arith.constant 0 : index
    %c0_132 = arith.constant 0 : index
    %152 = vector.load %arg9[%c7_130, %c0_131, %c0_132] : memref<16x8x8xf32, #tpu.memory_space<vmem>>, vector<1x8x8xf32>
    %153 = vector.shape_cast %152 : vector<1x8x8xf32> to vector<8x8xf32>
    %cst_133 = arith.constant dense<0.000000e+00> : vector<8x256xf32>
    %154 = tpu.matmul %153, %151, %cst_133 {dimension_numbers = #tpu.dot_dimension_numbers<[1], [0], [0], [1], [0, 0, 1, 1], [], []>} : vector<8x8xf32>, vector<8x256xf32>, vector<8x256xf32> -> vector<8x256xf32>
    %155 = arith.addf %147, %154 : vector<8x256xf32>
    %c0_134 = arith.constant 0 : index
    %c0_135 = arith.constant 0 : index
    %156 = vector.load %arg11[%c0_134, %c0_135] : memref<8x1xf32, #tpu.memory_space<vmem>>, vector<8x1xf32>
    %157 = vector.broadcast %156 : vector<8x1xf32> to vector<8x256xf32>
    %158 = arith.addf %155, %157 : vector<8x256xf32>
    %cst_136 = arith.constant 0.000000e+00 : f32
    %159 = vector.broadcast %cst_136 : f32 to vector<8x256xf32>
    %c0_137 = arith.constant 0 : index
    %c127_138 = arith.constant 127 : index
    %160 = vector.load %arg14[%c0_137, %c127_138] : memref<8x512xf32, #tpu.memory_space<vmem>>, vector<8x256xf32>
    %c3_139 = arith.constant 3 : index
    %c0_140 = arith.constant 0 : index
    %161 = vector.load %arg2[%c3_139, %c0_140] : memref<9x256xf32, #tpu.memory_space<vmem>>, vector<1x256xf32>
    %162 = vector.broadcast %161 : vector<1x256xf32> to vector<8x256xf32>
    %163 = arith.mulf %160, %162 : vector<8x256xf32>
    %c10 = arith.constant 10 : index
    %c0_141 = arith.constant 0 : index
    %c0_142 = arith.constant 0 : index
    %164 = vector.load %arg9[%c10, %c0_141, %c0_142] : memref<16x8x8xf32, #tpu.memory_space<vmem>>, vector<1x8x8xf32>
    %165 = vector.shape_cast %164 : vector<1x8x8xf32> to vector<8x8xf32>
    %cst_143 = arith.constant dense<0.000000e+00> : vector<8x256xf32>
    %166 = tpu.matmul %165, %163, %cst_143 {dimension_numbers = #tpu.dot_dimension_numbers<[1], [0], [0], [1], [0, 0, 1, 1], [], []>} : vector<8x8xf32>, vector<8x256xf32>, vector<8x256xf32> -> vector<8x256xf32>
    %167 = arith.addf %159, %166 : vector<8x256xf32>
    %c0_144 = arith.constant 0 : index
    %c128_145 = arith.constant 128 : index
    %168 = vector.load %arg14[%c0_144, %c128_145] : memref<8x512xf32, #tpu.memory_space<vmem>>, vector<8x256xf32>
    %c4_146 = arith.constant 4 : index
    %c0_147 = arith.constant 0 : index
    %169 = vector.load %arg2[%c4_146, %c0_147] : memref<9x256xf32, #tpu.memory_space<vmem>>, vector<1x256xf32>
    %170 = vector.broadcast %169 : vector<1x256xf32> to vector<8x256xf32>
    %171 = arith.mulf %168, %170 : vector<8x256xf32>
    %c11 = arith.constant 11 : index
    %c0_148 = arith.constant 0 : index
    %c0_149 = arith.constant 0 : index
    %172 = vector.load %arg9[%c11, %c0_148, %c0_149] : memref<16x8x8xf32, #tpu.memory_space<vmem>>, vector<1x8x8xf32>
    %173 = vector.shape_cast %172 : vector<1x8x8xf32> to vector<8x8xf32>
    %cst_150 = arith.constant dense<0.000000e+00> : vector<8x256xf32>
    %174 = tpu.matmul %173, %171, %cst_150 {dimension_numbers = #tpu.dot_dimension_numbers<[1], [0], [0], [1], [0, 0, 1, 1], [], []>} : vector<8x8xf32>, vector<8x256xf32>, vector<8x256xf32> -> vector<8x256xf32>
    %175 = arith.addf %167, %174 : vector<8x256xf32>
    %c0_151 = arith.constant 0 : index
    %c0_152 = arith.constant 0 : index
    %176 = vector.load %arg11[%c0_151, %c0_152] : memref<8x1xf32, #tpu.memory_space<vmem>>, vector<8x1xf32>
    %177 = vector.broadcast %176 : vector<8x1xf32> to vector<8x256xf32>
    %178 = arith.addf %175, %177 : vector<8x256xf32>
    %cst_153 = arith.constant 0.000000e+00 : f32
    %179 = vector.broadcast %cst_153 : f32 to vector<8x256xf32>
    %c0_154 = arith.constant 0 : index
    %c128_155 = arith.constant 128 : index
    %180 = vector.load %arg14[%c0_154, %c128_155] : memref<8x512xf32, #tpu.memory_space<vmem>>, vector<8x256xf32>
    %c4_156 = arith.constant 4 : index
    %c0_157 = arith.constant 0 : index
    %181 = vector.load %arg2[%c4_156, %c0_157] : memref<9x256xf32, #tpu.memory_space<vmem>>, vector<1x256xf32>
    %182 = vector.broadcast %181 : vector<1x256xf32> to vector<8x256xf32>
    %183 = arith.mulf %180, %182 : vector<8x256xf32>
    %c15 = arith.constant 15 : index
    %c0_158 = arith.constant 0 : index
    %c0_159 = arith.constant 0 : index
    %184 = vector.load %arg9[%c15, %c0_158, %c0_159] : memref<16x8x8xf32, #tpu.memory_space<vmem>>, vector<1x8x8xf32>
    %185 = vector.shape_cast %184 : vector<1x8x8xf32> to vector<8x8xf32>
    %cst_160 = arith.constant dense<0.000000e+00> : vector<8x256xf32>
    %186 = tpu.matmul %185, %183, %cst_160 {dimension_numbers = #tpu.dot_dimension_numbers<[1], [0], [0], [1], [0, 0, 1, 1], [], []>} : vector<8x8xf32>, vector<8x256xf32>, vector<8x256xf32> -> vector<8x256xf32>
    %187 = arith.addf %179, %186 : vector<8x256xf32>
    %c0_161 = arith.constant 0 : index
    %c0_162 = arith.constant 0 : index
    %188 = vector.load %arg11[%c0_161, %c0_162] : memref<8x1xf32, #tpu.memory_space<vmem>>, vector<8x1xf32>
    %189 = vector.broadcast %188 : vector<8x1xf32> to vector<8x256xf32>
    %190 = arith.addf %187, %189 : vector<8x256xf32>
    %191 = tpu.concatenate %138, %158, %178, %190 in 0 : vector<8x256xf32>, vector<8x256xf32>, vector<8x256xf32>, vector<8x256xf32> -> vector<32x256xf32>
    %c0_163 = arith.constant 0 : index
    %c0_164 = arith.constant 0 : index
    %c0_165 = arith.constant 0 : index
    %192 = vector.load %arg12[%c0_163, %c0_164, %c0_165] : memref<1x32x256xf32, #tpu.memory_space<vmem>>, vector<1x32x256xf32>
    %193 = vector.shape_cast %192 : vector<1x32x256xf32> to vector<32x256xf32>
    %194 = vector.shape_cast %191 : vector<32x256xf32> to vector<1x32x256xf32>
    tpu.vector_store %arg12[%c0_163, %c0_164, %c0_165], %194 {strides = array<i32>} : memref<1x32x256xf32, #tpu.memory_space<vmem>>, vector<1x32x256xf32>,
    return
  }
  func.func @transform_0(%arg0: i32) -> (i32, i32, i32) {
    %c0_i32 = arith.constant 0 : i32
    %c0_i32_0 = arith.constant 0 : i32
    %c0_i32_1 = arith.constant 0 : i32
    return %arg0, %c0_i32, %c0_i32_0 : i32, i32, i32
  }
  func.func @transform_1(%arg0: i32) -> (i32, i32) {
    %c0_i32 = arith.constant 0 : i32
    %c0_i32_0 = arith.constant 0 : i32
    %c0_i32_1 = arith.constant 0 : i32
    return %c0_i32, %c0_i32_0 : i32, i32
  }
  func.func @transform_2(%arg0: i32) -> (i32, i32, i32) {
    %c0_i32 = arith.constant 0 : i32
    %c0_i32_0 = arith.constant 0 : i32
    %c0_i32_1 = arith.constant 0 : i32
    %c0_i32_2 = arith.constant 0 : i32
    return %c0_i32, %c0_i32_0, %c0_i32_1 : i32, i32, i32
  }
  func.func @transform_3(%arg0: i32) -> (i32, i32) {
    %c0_i32 = arith.constant 0 : i32
    %c0_i32_0 = arith.constant 0 : i32
    %c0_i32_1 = arith.constant 0 : i32
    return %c0_i32, %c0_i32_0 : i32, i32
  }
  func.func @transform_4(%arg0: i32) -> (i32, i32) {
    %c0_i32 = arith.constant 0 : i32
    %c0_i32_0 = arith.constant 0 : i32
    %c0_i32_1 = arith.constant 0 : i32
    return %c0_i32, %c0_i32_0 : i32, i32
  }
  func.func @transform_5(%arg0: i32) -> (i32, i32) {
    %c0_i32 = arith.constant 0 : i32
    %c0_i32_0 = arith.constant 0 : i32
    %c0_i32_1 = arith.constant 0 : i32
    return %c0_i32, %c0_i32_0 : i32, i32
  }
  func.func @transform_6(%arg0: i32) -> (i32, i32) {
    %c0_i32 = arith.constant 0 : i32
    %c0_i32_0 = arith.constant 0 : i32
    %c0_i32_1 = arith.constant 0 : i32
    return %c0_i32, %c0_i32_0 : i32, i32
  }
  func.func @transform_7(%arg0: i32) -> (i32, i32) {
    %c0_i32 = arith.constant 0 : i32
    %c0_i32_0 = arith.constant 0 : i32
    %c0_i32_1 = arith.constant 0 : i32
    return %c0_i32, %c0_i32_0 : i32, i32
  }
  func.func @transform_8(%arg0: i32) -> (i32, i32, i32) {
    %c0_i32 = arith.constant 0 : i32
    %c0_i32_0 = arith.constant 0 : i32
    %c0_i32_1 = arith.constant 0 : i32
    %c0_i32_2 = arith.constant 0 : i32
    return %c0_i32, %c0_i32_0, %c0_i32_1 : i32, i32, i32
  }
  func.func @transform_9(%arg0: i32) -> (i32, i32) {
    %c0_i32 = arith.constant 0 : i32
    %c0_i32_0 = arith.constant 0 : i32
    %c0_i32_1 = arith.constant 0 : i32
    return %c0_i32, %c0_i32_0 : i32, i32
  }
  func.func @transform_10(%arg0: i32) -> (i32, i32) {
    %c0_i32 = arith.constant 0 : i32
    %c0_i32_0 = arith.constant 0 : i32
    %c0_i32_1 = arith.constant 0 : i32
    return %c0_i32, %c0_i32_0 : i32, i32
  }
  func.func @transform_11(%arg0: i32) -> (i32, i32, i32) {
    %c0_i32 = arith.constant 0 : i32
    %c0_i32_0 = arith.constant 0 : i32
    %c0_i32_1 = arith.constant 0 : i32
    return %arg0, %c0_i32, %c0_i32_0 : i32, i32, i32
  }
}

</mosaic_0001>

<llo_original>
// kernel: tpu_custom_call.1
$region0: #{tpu_custom_call.1}
  #allocation0 [shape = 'u32[]', space=smem, size = 0x4, offset = 0x4, fixed_abs, tag = 'smem constant byte address 0x4 - core index']
  #allocation1 [shape = 'u32[144,128]{1,0:T(1,128)}', space=vmem, size = 0x12000, scoped, tag = 'internal scratch']
  #allocation2 [shape = 'f32[4,512]{1,0:T(4,128)}', space=vmem, size = 0x2000, scoped, tag = 'scratch operand']
  #allocation3 [shape = 'f32[8,512]{1,0:T(8,128)}', space=vmem, size = 0x4000, scoped, tag = 'scratch operand']
  %s0 = inlined_call_operand.vmem [shape: f32[2,4,256], index: 0, kind: input, shape index: {}]
  %s1 = inlined_call_operand.vmem [shape: f32[9,256], index: 1, kind: input, shape index: {}]
  %s2 = inlined_call_operand.vmem [shape: f32[9,8,4], index: 2, kind: input, shape index: {}]
  %s3 = inlined_call_operand.vmem [shape: f32[8,1], index: 3, kind: input, shape index: {}]
  %s4 = inlined_call_operand.vmem [shape: f32[4,1], index: 4, kind: input, shape index: {}]
  %s5 = inlined_call_operand.vmem [shape: f32[4,1], index: 5, kind: input, shape index: {}]
  %s6 = inlined_call_operand.vmem [shape: f32[8,1], index: 6, kind: input, shape index: {}]
  %s7 = inlined_call_operand.vmem [shape: f32[8,1], index: 7, kind: input, shape index: {}]
  %s8 = inlined_call_operand.vmem [shape: f32[16,8,8], index: 8, kind: input, shape index: {}]
  %s9 = inlined_call_operand.vmem [shape: f32[8,4], index: 9, kind: input, shape index: {}]
  %s10 = inlined_call_operand.vmem [shape: f32[8,1], index: 10, kind: input, shape index: {}]
  %s11 = inlined_call_operand.hbm [shape: f32[2,32,256], index: 11, kind: output, shape index: {}]
  %s12 = sld [smem:[#allocation0]]
  $region77: #{tpu_custom_call.1} parent=0
    _
  %s14 = ssub.s32 1, %s12
  %s15 = scalar_select 0, %s14, %s12
  $region1: #{tpu_custom_call.1} parent=0
    #allocation4 [shape = 'u8[65536]{0}', space=vmem, size = 0x10000, scoped, tag = 'output window, operand 0']
    #allocation5 [shape = 's32[2]{0}', space=sflag, size = 0x8, scoped, tag = 'scoped memory for tpu_custom_call.1']
    %16 = vsyncpa [#allocation5], 0
    %s17 = scalar_lea.sflag [#allocation5], 1
    %18 = vsyncpa %s17, 0
    loop: start=0, step=1, limit=4
    $region2: #{tpu_custom_call.1} parent=1 // loop_pre_header
      _
    $region3: #{tpu_custom_call.1} parent=1 // loop_header
      %s20 = sphi 0, %s24
      %p21 = scmp.ge.s32.totalorder %s20, 4
      %s30 = sphi 0, %s32
      %s33 = sphi 0, %s30
      %s34 = sphi 0, %s33
      %s50 = sphi 0, %s34
      %s54 = sphi 0, %s54
      %s56 = sphi 0, %s54
      %s57 = sphi 0, %s56
      %s71 = sphi 0, %s57
      %s75 = sphi 0, %s75
      %s77 = sphi 0, %s75
      %s78 = sphi 0, %s77
      %s92 = sphi 0, %s78
      %s96 = sphi 0, %s96
      %s98 = sphi 0, %s96
      %s99 = sphi 0, %s98
      %s113 = sphi 0, %s99
      %s117 = sphi 0, %s117
      %s119 = sphi 0, %s117
      %s120 = sphi 0, %s119
      %s134 = sphi 0, %s120
      %s138 = sphi 0, %s138
      %s140 = sphi 0, %s138
      %s141 = sphi 0, %s140
      %s155 = sphi 0, %s141
      %s159 = sphi 0, %s159
      %s161 = sphi 0, %s159
      %s162 = sphi 0, %s161
      %s176 = sphi 0, %s162
      %s180 = sphi 0, %s180
      %s182 = sphi 0, %s180
      %s183 = sphi 0, %s182
      %s197 = sphi 0, %s183
      %s201 = sphi 0, %s201
      %s203 = sphi 0, %s201
      %s204 = sphi 0, %s203
      %s218 = sphi 0, %s204
      %s222 = sphi 0, %s222
      %s224 = sphi 0, %s222
      %s225 = sphi 0, %s224
      %s239 = sphi 0, %s225
      %s243 = sphi 0, %s243
      %s245 = sphi 0, %s243
      %s246 = sphi 0, %s245
      %s260 = sphi 0, %s246
      %s266 = sphi 0, %s268
      %s269 = sphi 0, %s266
      %s270 = sphi 0, %s269
      %s286 = sphi 0, %s270
    $region4: #{tpu_custom_call.1} parent=1 // loop_header_branch
      %23 = sbr.rel (%p21) target = $region8
    $region5: #{tpu_custom_call.1} parent=1 // loop_body
      %s25 = ssub.s32 %s20, 1
      %s26 = ssub.s32 %s20, 2
      %s27 = sadd.s32 %s20, 1
      %s28 = ssub.s32 %s20, %s27
      %p29 = scmp.eq.s32.totalorder %s28, 0
      %s31 = sadd.s32 %s30, 1
      %s32 = scalar_select %p29, %s30, %s31
      %p35 = pneg %p29
      %p36 = scmp.eq.s32.totalorder %s20, 1
      %p37 = por %p35, %p36
      %p38 = scmp.ne.s32.totalorder %s30, %s33
      %p39 = scmp.eq.s32.totalorder %s20, 0
      %p40 = por %p38, %p39
      %p41 = scmp.ne.s32.totalorder %s30, %s33
      %p42 = scmp.eq.s32.totalorder %s25, 1
      %p43 = por %p41, %p42
      %p44 = scmp.ne.s32.totalorder %s33, %s34
      %p45 = scmp.eq.s32.totalorder %s25, 0
      %p46 = por %p44, %p45
      %p47 = scmp.ne.s32.totalorder %s33, %s34
      %p48 = scmp.eq.s32.totalorder %s26, 1
      %p49 = por %p47, %p48
      %p51 = scmp.ne.s32.totalorder %s34, %s50
      %p52 = scmp.eq.s32.totalorder %s26, 0
      %p53 = por %p51, %p52
      %s55 = sadd.s32 %s54, 1
      %p58 = scmp.eq.s32.totalorder %s20, 1
      %p59 = scmp.ne.s32.totalorder %s54, %s56
      %p60 = scmp.eq.s32.totalorder %s20, 0
      %p61 = por %p59, %p60
      %p62 = scmp.ne.s32.totalorder %s54, %s56
      %p63 = scmp.eq.s32.totalorder %s25, 1
      %p64 = por %p62, %p63
      %p65 = scmp.ne.s32.totalorder %s56, %s57
      %p66 = scmp.eq.s32.totalorder %s25, 0
      %p67 = por %p65, %p66
      %p68 = scmp.ne.s32.totalorder %s56, %s57
      %p69 = scmp.eq.s32.totalorder %s26, 1
      %p70 = por %p68, %p69
      %p72 = scmp.ne.s32.totalorder %s57, %s71
      %p73 = scmp.eq.s32.totalorder %s26, 0
      %p74 = por %p72, %p73
      %s76 = sadd.s32 %s75, 1
      %p79 = scmp.eq.s32.totalorder %s20, 1
      %p80 = scmp.ne.s32.totalorder %s75, %s77
      %p81 = scmp.eq.s32.totalorder %s20, 0
      %p82 = por %p80, %p81
      %p83 = scmp.ne.s32.totalorder %s75, %s77
      %p84 = scmp.eq.s32.totalorder %s25, 1
      %p85 = por %p83, %p84
      %p86 = scmp.ne.s32.totalorder %s77, %s78
      %p87 = scmp.eq.s32.totalorder %s25, 0
      %p88 = por %p86, %p87
      %p89 = scmp.ne.s32.totalorder %s77, %s78
      %p90 = scmp.eq.s32.totalorder %s26, 1
      %p91 = por %p89, %p90
      %p93 = scmp.ne.s32.totalorder %s78, %s92
      %p94 = scmp.eq.s32.totalorder %s26, 0
      %p95 = por %p93, %p94
      %s97 = sadd.s32 %s96, 1
      %p100 = scmp.eq.s32.totalorder %s20, 1
      %p101 = scmp.ne.s32.totalorder %s96, %s98
      %p102 = scmp.eq.s32.totalorder %s20, 0
      %p103 = por %p101, %p102
      %p104 = scmp.ne.s32.totalorder %s96, %s98
      %p105 = scmp.eq.s32.totalorder %s25, 1
      %p106 = por %p104, %p105
      %p107 = scmp.ne.s32.totalorder %s98, %s99
      %p108 = scmp.eq.s32.totalorder %s25, 0
      %p109 = por %p107, %p108
      %p110 = scmp.ne.s32.totalorder %s98, %s99
      %p111 = scmp.eq.s32.totalorder %s26, 1
      %p112 = por %p110, %p111
      %p114 = scmp.ne.s32.totalorder %s99, %s113
      %p115 = scmp.eq.s32.totalorder %s26, 0
      %p116 = por %p114, %p115
      %s118 = sadd.s32 %s117, 1
      %p121 = scmp.eq.s32.totalorder %s20, 1
      %p122 = scmp.ne.s32.totalorder %s117, %s119
      %p123 = scmp.eq.s32.totalorder %s20, 0
      %p124 = por %p122, %p123
      %p125 = scmp.ne.s32.totalorder %s117, %s119
      %p126 = scmp.eq.s32.totalorder %s25, 1
      %p127 = por %p125, %p126
      %p128 = scmp.ne.s32.totalorder %s119, %s120
      %p129 = scmp.eq.s32.totalorder %s25, 0
      %p130 = por %p128, %p129
      %p131 = scmp.ne.s32.totalorder %s119, %s120
      %p132 = scmp.eq.s32.totalorder %s26, 1
      %p133 = por %p131, %p132
      %p135 = scmp.ne.s32.totalorder %s120, %s134
      %p136 = scmp.eq.s32.totalorder %s26, 0
      %p137 = por %p135, %p136
      %s139 = sadd.s32 %s138, 1
      %p142 = scmp.eq.s32.totalorder %s20, 1
      %p143 = scmp.ne.s32.totalorder %s138, %s140
      %p144 = scmp.eq.s32.totalorder %s20, 0
      %p145 = por %p143, %p144
      %p146 = scmp.ne.s32.totalorder %s138, %s140
      %p147 = scmp.eq.s32.totalorder %s25, 1
      %p148 = por %p146, %p147
      %p149 = scmp.ne.s32.totalorder %s140, %s141
      %p150 = scmp.eq.s32.totalorder %s25, 0
      %p151 = por %p149, %p150
      %p152 = scmp.ne.s32.totalorder %s140, %s141
      %p153 = scmp.eq.s32.totalorder %s26, 1
      %p154 = por %p152, %p153
      %p156 = scmp.ne.s32.totalorder %s141, %s155
      %p157 = scmp.eq.s32.totalorder %s26, 0
      %p158 = por %p156, %p157
      %s160 = sadd.s32 %s159, 1
      %p163 = scmp.eq.s32.totalorder %s20, 1
      %p164 = scmp.ne.s32.totalorder %s159, %s161
      %p165 = scmp.eq.s32.totalorder %s20, 0
      %p166 = por %p164, %p165
      %p167 = scmp.ne.s32.totalorder %s159, %s161
      %p168 = scmp.eq.s32.totalorder %s25, 1
      %p169 = por %p167, %p168
      %p170 = scmp.ne.s32.totalorder %s161, %s162
      %p171 = scmp.eq.s32.totalorder %s25, 0
      %p172 = por %p170, %p171
      %p173 = scmp.ne.s32.totalorder %s161, %s162
      %p174 = scmp.eq.s32.totalorder %s26, 1
      %p175 = por %p173, %p174
      %p177 = scmp.ne.s32.totalorder %s162, %s176
      %p178 = scmp.eq.s32.totalorder %s26, 0
      %p179 = por %p177, %p178
      %s181 = sadd.s32 %s180, 1
      %p184 = scmp.eq.s32.totalorder %s20, 1
      %p185 = scmp.ne.s32.totalorder %s180, %s182
      %p186 = scmp.eq.s32.totalorder %s20, 0
      %p187 = por %p185, %p186
      %p188 = scmp.ne.s32.totalorder %s180, %s182
      %p189 = scmp.eq.s32.totalorder %s25, 1
      %p190 = por %p188, %p189
      %p191 = scmp.ne.s32.totalorder %s182, %s183
      %p192 = scmp.eq.s32.totalorder %s25, 0
      %p193 = por %p191, %p192
      %p194 = scmp.ne.s32.totalorder %s182, %s183
      %p195 = scmp.eq.s32.totalorder %s26, 1
      %p196 = por %p194, %p195
      %p198 = scmp.ne.s32.totalorder %s183, %s197
      %p199 = scmp.eq.s32.totalorder %s26, 0
      %p200 = por %p198, %p199
      %s202 = sadd.s32 %s201, 1
      %p205 = scmp.eq.s32.totalorder %s20, 1
      %p206 = scmp.ne.s32.totalorder %s201, %s203
      %p207 = scmp.eq.s32.totalorder %s20, 0
      %p208 = por %p206, %p207
      %p209 = scmp.ne.s32.totalorder %s201, %s203
      %p210 = scmp.eq.s32.totalorder %s25, 1
      %p211 = por %p209, %p210
      %p212 = scmp.ne.s32.totalorder %s203, %s204
      %p213 = scmp.eq.s32.totalorder %s25, 0
      %p214 = por %p212, %p213
      %p215 = scmp.ne.s32.totalorder %s203, %s204
      %p216 = scmp.eq.s32.totalorder %s26, 1
      %p217 = por %p215, %p216
      %p219 = scmp.ne.s32.totalorder %s204, %s218
      %p220 = scmp.eq.s32.totalorder %s26, 0
      %p221 = por %p219, %p220
      %s223 = sadd.s32 %s222, 1
      %p226 = scmp.eq.s32.totalorder %s20, 1
      %p227 = scmp.ne.s32.totalorder %s222, %s224
      %p228 = scmp.eq.s32.totalorder %s20, 0
      %p229 = por %p227, %p228
      %p230 = scmp.ne.s32.totalorder %s222, %s224
      %p231 = scmp.eq.s32.totalorder %s25, 1
      %p232 = por %p230, %p231
      %p233 = scmp.ne.s32.totalorder %s224, %s225
      %p234 = scmp.eq.s32.totalorder %s25, 0
      %p235 = por %p233, %p234
      %p236 = scmp.ne.s32.totalorder %s224, %s225
      %p237 = scmp.eq.s32.totalorder %s26, 1
      %p238 = por %p236, %p237
      %p240 = scmp.ne.s32.totalorder %s225, %s239
      %p241 = scmp.eq.s32.totalorder %s26, 0
      %p242 = por %p240, %p241
      %s244 = sadd.s32 %s243, 1
      %p247 = scmp.eq.s32.totalorder %s20, 1
      %p248 = scmp.ne.s32.totalorder %s243, %s245
      %p249 = scmp.eq.s32.totalorder %s20, 0
      %p250 = por %p248, %p249
      %p251 = scmp.ne.s32.totalorder %s243, %s245
      %p252 = scmp.eq.s32.totalorder %s25, 1
      %p253 = por %p251, %p252
      %p254 = scmp.ne.s32.totalorder %s245, %s246
      %p255 = scmp.eq.s32.totalorder %s25, 0
      %p256 = por %p254, %p255
      %p257 = scmp.ne.s32.totalorder %s245, %s246
      %p258 = scmp.eq.s32.totalorder %s26, 1
      %p259 = por %p257, %p258
      %p261 = scmp.ne.s32.totalorder %s246, %s260
      %p262 = scmp.eq.s32.totalorder %s26, 0
      %p263 = por %p261, %p262
      %s264 = ssub.s32 %s20, %s27
      %p265 = scmp.eq.s32.totalorder %s264, 0
      %s267 = sadd.s32 %s266, 1
      %s268 = scalar_select %p265, %s266, %s267
      %p271 = pneg %p265
      %p272 = scmp.eq.s32.totalorder %s20, 1
      %p273 = por %p271, %p272
      %p274 = scmp.ne.s32.totalorder %s266, %s269
      %p275 = scmp.eq.s32.totalorder %s20, 0
      %p276 = por %p274, %p275
      %p277 = scmp.ne.s32.totalorder %s266, %s269
      %p278 = scmp.eq.s32.totalorder %s25, 1
      %p279 = por %p277, %p278
      %p280 = scmp.ne.s32.totalorder %s269, %s270
      %p281 = scmp.eq.s32.totalorder %s25, 0
      %p282 = por %p280, %p281
      %p283 = scmp.ne.s32.totalorder %s269, %s270
      %p284 = scmp.eq.s32.totalorder %s26, 1
      %p285 = por %p283, %p284
      %p287 = scmp.ne.s32.totalorder %s270, %s286
      %p288 = scmp.eq.s32.totalorder %s26, 0
      %p289 = por %p287, %p288
      %p290 = scmp.le.s32.totalorder 1, %s20
      %p291 = scmp.lt.s32.totalorder %s20, 3
      %p292 = pnand %p290, %p291
      %p293 = pneg %p292
      // Predicated region
      $region9: #{tpu_custom_call.1} parent=5 // pred_check
        _
      $region10: #{tpu_custom_call.1} parent=5 // pred_check_branch
        %295 = sbr.rel (%p292) target = $region12
      $region11: #{tpu_custom_call.1} parent=5 // pred_region
        %s296 = ssub.s32 %s20, 1
        // Predicated region
        $region13: #{tpu_custom_call.1} parent=11 // pred_check
          %p297 = pneg %p67
        $region14: #{tpu_custom_call.1} parent=11 // pred_check_branch
          %299 = sbr.rel (%p297) target = $region16
        $region15: #{tpu_custom_call.1} parent=11 // pred_region
          _
        $region16: #{tpu_custom_call.1} parent=11 // pred_fallthru
          _
        // Predicated region
        $region17: #{tpu_custom_call.1} parent=11 // pred_check
          %p300 = pneg %p88
        $region18: #{tpu_custom_call.1} parent=11 // pred_check_branch
          %302 = sbr.rel (%p300) target = $region20
        $region19: #{tpu_custom_call.1} parent=11 // pred_region
          _
        $region20: #{tpu_custom_call.1} parent=11 // pred_fallthru
          _
        // Predicated region
        $region21: #{tpu_custom_call.1} parent=11 // pred_check
          %p303 = pneg %p109
        $region22: #{tpu_custom_call.1} parent=11 // pred_check_branch
          %305 = sbr.rel (%p303) target = $region24
        $region23: #{tpu_custom_call.1} parent=11 // pred_region
          _
        $region24: #{tpu_custom_call.1} parent=11 // pred_fallthru
          _
        // Predicated region
        $region25: #{tpu_custom_call.1} parent=11 // pred_check
          %p306 = pneg %p130
        $region26: #{tpu_custom_call.1} parent=11 // pred_check_branch
          %308 = sbr.rel (%p306) target = $region28
        $region27: #{tpu_custom_call.1} parent=11 // pred_region
          _
        $region28: #{tpu_custom_call.1} parent=11 // pred_fallthru
          _
        // Predicated region
        $region29: #{tpu_custom_call.1} parent=11 // pred_check
          %p309 = pneg %p151
        $region30: #{tpu_custom_call.1} parent=11 // pred_check_branch
          %311 = sbr.rel (%p309) target = $region32
        $region31: #{tpu_custom_call.1} parent=11 // pred_region
          _
        $region32: #{tpu_custom_call.1} parent=11 // pred_fallthru
          _
        // Predicated region
        $region33: #{tpu_custom_call.1} parent=11 // pred_check
          %p312 = pneg %p172
        $region34: #{tpu_custom_call.1} parent=11 // pred_check_branch
          %314 = sbr.rel (%p312) target = $region36
        $region35: #{tpu_custom_call.1} parent=11 // pred_region
          _
        $region36: #{tpu_custom_call.1} parent=11 // pred_fallthru
          _
        // Predicated region
        $region37: #{tpu_custom_call.1} parent=11 // pred_check
          %p315 = pneg %p193
        $region38: #{tpu_custom_call.1} parent=11 // pred_check_branch
          %317 = sbr.rel (%p315) target = $region40
        $region39: #{tpu_custom_call.1} parent=11 // pred_region
          _
        $region40: #{tpu_custom_call.1} parent=11 // pred_fallthru
          _
        // Predicated region
        $region41: #{tpu_custom_call.1} parent=11 // pred_check
          %p318 = pneg %p214
        $region42: #{tpu_custom_call.1} parent=11 // pred_check_branch
          %320 = sbr.rel (%p318) target = $region44
        $region43: #{tpu_custom_call.1} parent=11 // pred_region
          _
        $region44: #{tpu_custom_call.1} parent=11 // pred_fallthru
          _
        // Predicated region
        $region45: #{tpu_custom_call.1} parent=11 // pred_check
          %p321 = pneg %p235
        $region46: #{tpu_custom_call.1} parent=11 // pred_check_branch
          %323 = sbr.rel (%p321) target = $region48
        $region47: #{tpu_custom_call.1} parent=11 // pred_region
          _
        $region48: #{tpu_custom_call.1} parent=11 // pred_fallthru
          _
        // Predicated region
        $region49: #{tpu_custom_call.1} parent=11 // pred_check
          %p324 = pneg %p256
        $region50: #{tpu_custom_call.1} parent=11 // pred_check_branch
          %326 = sbr.rel (%p324) target = $region52
        $region51: #{tpu_custom_call.1} parent=11 // pred_region
          _
        $region52: #{tpu_custom_call.1} parent=11 // pred_fallthru
          _
      $region12: #{tpu_custom_call.1} parent=5 // pred_fallthru
        _
      %p327 = scmp.lt.s32.totalorder %s20, 2
      // Predicated region
      $region53: #{tpu_custom_call.1} parent=5 // pred_check
        %p328 = pneg %p327
      $region54: #{tpu_custom_call.1} parent=5 // pred_check_branch
        %330 = sbr.rel (%p328) target = $region56
      $region55: #{tpu_custom_call.1} parent=5 // pred_region
        // Predicated region
        $region57: #{tpu_custom_call.1} parent=55 // pred_check
          %p331 = pneg %p40
        $region58: #{tpu_custom_call.1} parent=55 // pred_check_branch
          %333 = sbr.rel (%p331) target = $region60
        $region59: #{tpu_custom_call.1} parent=55 // pred_region
          %p334 = scmp.lt.s32.totalorder %s20, 1
          %s335 = scalar_select %p334, %s20, 1
          %s336 = smul.addr %s335, 2
          %s337 = smul.addr %s336, 4
          %s338 = scalar_lea.vmem %s0, %s337
        $region60: #{tpu_custom_call.1} parent=55 // pred_fallthru
          _
      $region56: #{tpu_custom_call.1} parent=5 // pred_fallthru
        _
      %p339 = scmp.le.s32.totalorder 1, %s20
      %p340 = scmp.lt.s32.totalorder %s20, 3
      %p341 = pnand %p339, %p340
      %p342 = pneg %p341
      // Predicated region
      $region61: #{tpu_custom_call.1} parent=5 // pred_check
        _
      $region62: #{tpu_custom_call.1} parent=5 // pred_check_branch
        %344 = sbr.rel (%p341) target = $region64
      $region63: #{tpu_custom_call.1} parent=5 // pred_region
        %s345 = ssub.s32 %s20, 1
        %p346 = scmp.lt.s32.totalorder %s25, 1
        %s347 = scalar_select %p346, %s25, 1
        %s348 = smul.addr %s347, 2
        %s349 = smul.addr %s348, 4
        %s350 = scalar_lea.vmem %s0, %s349
        %p351 = pneg %p46
        %p352 = pneg %p43
        %p353 = pneg %p67
        %p354 = pneg %p64
        %p355 = pneg %p88
        %p356 = pneg %p85
        %p357 = pneg %p109
        %p358 = pneg %p106
        %p359 = pneg %p130
        %p360 = pneg %p127
        %p361 = pneg %p151
        %p362 = pneg %p148
        %p363 = pneg %p172
        %p364 = pneg %p169
        %p365 = pneg %p193
        %p366 = pneg %p190
        %p367 = pneg %p214
        %p368 = pneg %p211
        %p369 = pneg %p235
        %p370 = pneg %p232
        %p371 = pneg %p256
        %p372 = pneg %p253
        %p373 = pneg %p282
        %p374 = pneg %p279
        %s375 = sand.u32 %s269, 1
        %s376 = scalar_lea.sflag [#allocation5], %s375
        %s377 = sand.u32 %s269, 1
        %s378 = smul.addr %s377, 64
        %s379 = scalar_lea.vmem [#allocation4], %s378
        %p380 = scmp.lt.s32.totalorder %s25, 1
        %s381 = scalar_select %p380, %s25, 1
        %s382 = smul.addr %s381, 2
        %s383 = smul.addr %s382, 4
        %s384 = scalar_lea.vmem %s0, %s383
        %v385 = vld [vmem:[%s384] sm:$0xff]
        %v386 = vmax.f32 %v385, 0.0
        %v387 = vld [vmem:[%s4] sm:$0xf]
        %389 = vset.pattern.permute.xlu0 0
        %390 = vperm.xlu0 %389, %v387
        %v391 = vpop.permute.xlu0 %390
        %v393 = vunpack.c.l.s4 839922192
        %v394 = vunpack.c.0.s8 %v393
        %v395 = vlaneseq
        %v396 = vshrl.u32 %v395, 7
        %v397 = vsub.s32 %v394, %v396
        %v398 = vrot.slane %v391, %v397
        %v400 = vmul.f32 %v386, %v398
        %v401 = vld [vmem:[%s5] sm:$0xf]
        %403 = vset.pattern.permute.xlu0 0
        %404 = vperm.xlu0 %403, %v401
        %v405 = vpop.permute.xlu0 %404
        %v407 = vunpack.c.l.s4 839922192
        %v408 = vunpack.c.0.s8 %v407
        %v409 = vlaneseq
        %v410 = vshrl.u32 %v409, 7
        %v411 = vsub.s32 %v408, %v410
        %v412 = vrot.slane %v405, %v411
        %v414 = vadd.f32 %v400, %v412
        %415 = vst [vmem:[#allocation2] sm:$0xff] 0.0
        %416 = vst [vmem:[#allocation2 + $0x8] sm:$0xff] 0.0
        %417 = vst [vmem:[#allocation2 + $0x4] sm:$0xff] %v414
        %v418 = vld [vmem:[#allocation2] sm:$0xff]
        %v419 = vld [vmem:[#allocation2 + $0x8] sm:$0xf]
        %v420 = vld [vmem:[%s1] ss:$8 sm:$0x3]
        %v422 = vlaneseq
        %v423 = vshrl.u32 %v422, 7
        %v424 = vsub.s32 0, %v423
        %v425 = vrot.slane %v420, %v424
        %v426 = vlaneseq
        %v427 = vshrl.u32 %v426, 7
        %v428 = vsub.s32 1, %v427
        %v429 = vrot.slane %v420, %v428
        %v430 = vcombine.low %v425, %v429
        %431 = vrot.lane.b32.xlu0 %v430, 111
        %v432 = vpop.permute.xlu0 %431
        %v433 = vrot.slane %v432, 4
        %vm434 = vcmask 908288
        %v435 = vsel %vm434, %v433, %v432
        %v438 = vmul.f32 %v418, %v435
        %v439 = vmul.f32 %v419, %v433
        %v440 = vld [vmem:[%s2] sm:$0xff]
        %s441 = scalar_lea.vmem %s1, 1
        %v442 = vld [vmem:[%s441] ss:$8 sm:$0x3]
        %v444 = vlaneseq
        %v445 = vshrl.u32 %v444, 7
        %v446 = vsub.s32 0, %v445
        %v447 = vrot.slane %v442, %v446
        %v448 = vlaneseq
        %v449 = vshrl.u32 %v448, 7
        %v450 = vsub.s32 1, %v449
        %v451 = vrot.slane %v442, %v450
        %v452 = vcombine.low %v447, %v451
        %453 = vrot.lane.b32.xlu0 %v452, 112
        %v454 = vpop.permute.xlu0 %453
        %v455 = vrot.slane %v454, 4
        %vm456 = vcmask 916480
        %v457 = vsel %vm456, %v455, %v454
        %v460 = vmul.f32 %v418, %v457
        %v461 = vmul.f32 %v419, %v455
        %s462 = scalar_lea.vmem %s2, 8
        %v463 = vld [vmem:[%s462] sm:$0xff]
        %v466 = vcombine.high %v460, %v460
        %467 = vrot.lane.b32.xlu0 %v460, 16
        %v468 = vpop.permute.xlu0 %467
        %469 = vrot.lane.b32.xlu0 %v466, 16
        %v470 = vpop.permute.xlu0 %469
        %471 = vrot.lane.b32.xlu0 %v461, 16
        %v472 = vpop.permute.xlu0 %471
        %vm473 = vcmask 130048
        %v474 = vsel %vm473, %v468, %v470
        %v475 = vsel %vm473, %v470, %v472
        %vm476 = vcmask 31744
        %v478 = vsel %vm476, %v463, 0
        %vm480 = vcmask 1043456
        %v481 = vsel %vm480, %v474, 0
        %v483 = vsel %vm480, %v475, 0
        %485 = vmatprep.subr.mxu0 0.0
        %486 = vmatpush1.msra.mxu0 0.0
        %487 = vmatprep.subr.mxu0 0.0
        %488 = vmatpush1.msra.mxu0 0.0
        %489 = vmatprep.subr.mxu0 0.0
        %490 = vmatpush1.msra.mxu0 0.0
        %491 = vmatprep.subr.mxu0 0.0
        %492 = vmatpush1.msra.mxu0 0.0
        %493 = vmatprep.subr.mxu0 0.0
        %494 = vmatpush1.msra.mxu0 0.0
        %495 = vmatprep.subr.mxu0 0.0
        %496 = vmatpush1.msra.mxu0 0.0
        %497 = vmatprep.subr.mxu0 0.0
        %498 = vmatpush1.msra.mxu0 0.0
        %499 = vmatprep.subr.mxu0 0.0
        %500 = vmatpush1.msra.mxu0 0.0
        %501 = vmatprep.subr.mxu0 0.0
        %502 = vmatpush1.msra.mxu0 0.0
        %503 = vmatprep.subr.mxu0 0.0
        %504 = vmatpush1.msra.mxu0 0.0
        %505 = vmatprep.subr.mxu0 0.0
        %506 = vmatpush1.msra.mxu0 0.0
        %507 = vmatprep.subr.mxu0 0.0
        %508 = vmatpush1.msra.mxu0 0.0
        %509 = vmatprep.subr.mxu0 0.0
        %510 = vmatpush1.msra.mxu0 0.0
        %511 = vmatprep.subr.mxu0 0.0
        %512 = vmatpush1.msra.mxu0 0.0
        %513 = vmatprep.subr.mxu0 0.0
        %514 = vmatpush1.msra.mxu0 0.0
        %515 = vmatprep.subr.mxu0 %v483
        %516 = vmatpush1.msra.mxu0 %v481
        %517 = vmatprep.subr.mxu0 0.0
        %518 = vmatpush2.msra.mxu0 0.0
        %519 = vmatprep.subr.mxu0 0.0
        %520 = vmatpush2.msra.mxu0 0.0
        %521 = vmatprep.subr.mxu0 0.0
        %522 = vmatpush2.msra.mxu0 0.0
        %523 = vmatprep.subr.mxu0 0.0
        %524 = vmatpush2.msra.mxu0 0.0
        %525 = vmatprep.subr.mxu0 0.0
        %526 = vmatpush2.msra.mxu0 0.0
        %527 = vmatprep.subr.mxu0 0.0
        %528 = vmatpush2.msra.mxu0 0.0
        %529 = vmatprep.subr.mxu0 0.0
        %530 = vmatpush2.msra.mxu0 0.0
        %531 = vmatprep.subr.mxu0 0.0
        %532 = vmatpush2.msra.mxu0 0.0
        %533 = vmatprep.subr.mxu0 0.0
        %534 = vmatpush2.msra.mxu0 0.0
        %535 = vmatprep.subr.mxu0 0.0
        %536 = vmatpush2.msra.mxu0 0.0
        %537 = vmatprep.subr.mxu0 0.0
        %538 = vmatpush2.msra.mxu0 0.0
        %539 = vmatprep.subr.mxu0 0.0
        %540 = vmatpush2.msra.mxu0 0.0
        %541 = vmatprep.subr.mxu0 0.0
        %542 = vmatpush2.msra.mxu0 0.0
        %543 = vmatprep.subr.mxu0 0.0
        %544 = vmatpush2.msra.mxu0 0.0
        %545 = vmatprep.subr.mxu0 0.0
        %546 = vmatpush2.msra.mxu0 0.0
        %547 = vmatprep.subr.mxu0 0.0
        %548 = vmatpush2.msra.mxu0 0.0
        %549 = vmatprep.mubr.f32.mxu0 0.0
        %550 = vmatmul.mubr.f32.gmra.mxu0 %v478
        %v551 = vpop.f32.mrf.mxu0
        %v552 = vadd.f32 0.0, %v551
        %v553 = vpop.f32.mrf.mxu0
        %v554 = vadd.f32 0.0, %v553
        %555 = vdwg.mxu0
        %v558 = vcombine.high %v438, %v438
        %559 = vrot.lane.b32.xlu0 %v438, 17
        %v560 = vpop.permute.xlu0 %559
        %561 = vrot.lane.b32.xlu0 %v558, 17
        %v562 = vpop.permute.xlu0 %561
        %563 = vrot.lane.b32.xlu0 %v439, 17
        %v564 = vpop.permute.xlu0 %563
        %vm565 = vcmask 138240
        %v566 = vsel %vm565, %v560, %v562
        %v567 = vsel %vm565, %v562, %v564
        %v569 = vsel %vm476, %v440, 0
        %v571 = vsel %vm480, %v566, 0
        %v573 = vsel %vm480, %v567, 0
        %575 = vmatprep.subr.mxu0 0.0
        %576 = vmatpush1.msra.mxu0 0.0
        %577 = vmatprep.subr.mxu0 0.0
        %578 = vmatpush1.msra.mxu0 0.0
        %579 = vmatprep.subr.mxu0 0.0
        %580 = vmatpush1.msra.mxu0 0.0
        %581 = vmatprep.subr.mxu0 0.0
        %582 = vmatpush1.msra.mxu0 0.0
        %583 = vmatprep.subr.mxu0 0.0
        %584 = vmatpush1.msra.mxu0 0.0
        %585 = vmatprep.subr.mxu0 0.0
        %586 = vmatpush1.msra.mxu0 0.0
        %587 = vmatprep.subr.mxu0 0.0
        %588 = vmatpush1.msra.mxu0 0.0
        %589 = vmatprep.subr.mxu0 0.0
        %590 = vmatpush1.msra.mxu0 0.0
        %591 = vmatprep.subr.mxu0 0.0
        %592 = vmatpush1.msra.mxu0 0.0
        %593 = vmatprep.subr.mxu0 0.0
        %594 = vmatpush1.msra.mxu0 0.0
        %595 = vmatprep.subr.mxu0 0.0
        %596 = vmatpush1.msra.mxu0 0.0
        %597 = vmatprep.subr.mxu0 0.0
        %598 = vmatpush1.msra.mxu0 0.0
        %599 = vmatprep.subr.mxu0 0.0
        %600 = vmatpush1.msra.mxu0 0.0
        %601 = vmatprep.subr.mxu0 0.0
        %602 = vmatpush1.msra.mxu0 0.0
        %603 = vmatprep.subr.mxu0 0.0
        %604 = vmatpush1.msra.mxu0 0.0
        %605 = vmatprep.subr.mxu0 %v573
        %606 = vmatpush1.msra.mxu0 %v571
        %607 = vmatprep.subr.mxu0 0.0
        %608 = vmatpush2.msra.mxu0 0.0
        %609 = vmatprep.subr.mxu0 0.0
        %610 = vmatpush2.msra.mxu0 0.0
        %611 = vmatprep.subr.mxu0 0.0
        %612 = vmatpush2.msra.mxu0 0.0
        %613 = vmatprep.subr.mxu0 0.0
        %614 = vmatpush2.msra.mxu0 0.0
        %615 = vmatprep.subr.mxu0 0.0
        %616 = vmatpush2.msra.mxu0 0.0
        %617 = vmatprep.subr.mxu0 0.0
        %618 = vmatpush2.msra.mxu0 0.0
        %619 = vmatprep.subr.mxu0 0.0
        %620 = vmatpush2.msra.mxu0 0.0
        %621 = vmatprep.subr.mxu0 0.0
        %622 = vmatpush2.msra.mxu0 0.0
        %623 = vmatprep.subr.mxu0 0.0
        %624 = vmatpush2.msra.mxu0 0.0
        %625 = vmatprep.subr.mxu0 0.0
        %626 = vmatpush2.msra.mxu0 0.0
        %627 = vmatprep.subr.mxu0 0.0
        %628 = vmatpush2.msra.mxu0 0.0
        %629 = vmatprep.subr.mxu0 0.0
        %630 = vmatpush2.msra.mxu0 0.0
        %631 = vmatprep.subr.mxu0 0.0
        %632 = vmatpush2.msra.mxu0 0.0
        %633 = vmatprep.subr.mxu0 0.0
        %634 = vmatpush2.msra.mxu0 0.0
        %635 = vmatprep.subr.mxu0 0.0
        %636 = vmatpush2.msra.mxu0 0.0
        %637 = vmatprep.subr.mxu0 0.0
        %638 = vmatpush2.msra.mxu0 0.0
        %639 = vmatprep.mubr.f32.mxu0 0.0
        %640 = vmatmul.mubr.f32.gmra.mxu0 %v569
        %v641 = vpop.f32.mrf.mxu0
        %v642 = vadd.f32 %v552, %v641
        %v643 = vpop.f32.mrf.mxu0
        %v644 = vadd.f32 %v554, %v643
        %645 = vdwg.mxu0
        %v646 = vld [vmem:[#allocation2] sm:$0xff]
        %v647 = vld [vmem:[#allocation2 + $0x8] sm:$0xf]
        %s648 = scalar_lea.vmem %s1, 2
        %v649 = vld [vmem:[%s648] ss:$8 sm:$0x3]
        %v651 = vlaneseq
        %v652 = vshrl.u32 %v651, 7
        %v653 = vsub.s32 0, %v652
        %v654 = vrot.slane %v649, %v653
        %v655 = vlaneseq
        %v656 = vshrl.u32 %v655, 7
        %v657 = vsub.s32 1, %v656
        %v658 = vrot.slane %v649, %v657
        %v659 = vcombine.low %v654, %v658
        %660 = vrot.lane.b32.xlu0 %v659, 113
        %v661 = vpop.permute.xlu0 %660
        %v662 = vrot.slane %v661, 4
        %vm663 = vcmask 924672
        %v664 = vsel %vm663, %v662, %v661
        %v667 = vmul.f32 %v646, %v664
        %v668 = vmul.f32 %v647, %v662
        %s669 = scalar_lea.vmem %s2, 16
        %v670 = vld [vmem:[%s669] sm:$0xff]
        %v673 = vcombine.high %v667, %v667
        %674 = vrot.lane.b32.xlu0 %v667, 15
        %v675 = vpop.permute.xlu0 %674
        %676 = vrot.lane.b32.xlu0 %v673, 15
        %v677 = vpop.permute.xlu0 %676
        %678 = vrot.lane.b32.xlu0 %v668, 15
        %v679 = vpop.permute.xlu0 %678
        %vm680 = vcmask 121856
        %v681 = vsel %vm680, %v675, %v677
        %v682 = vsel %vm680, %v677, %v679
        %v684 = vsel %vm476, %v670, 0
        %v686 = vsel %vm480, %v681, 0
        %v688 = vsel %vm480, %v682, 0
        %690 = vmatprep.subr.mxu0 0.0
        %691 = vmatpush1.msra.mxu0 0.0
        %692 = vmatprep.subr.mxu0 0.0
        %693 = vmatpush1.msra.mxu0 0.0
        %694 = vmatprep.subr.mxu0 0.0
        %695 = vmatpush1.msra.mxu0 0.0
        %696 = vmatprep.subr.mxu0 0.0
        %697 = vmatpush1.msra.mxu0 0.0
        %698 = vmatprep.subr.mxu0 0.0
        %699 = vmatpush1.msra.mxu0 0.0
        %700 = vmatprep.subr.mxu0 0.0
        %701 = vmatpush1.msra.mxu0 0.0
        %702 = vmatprep.subr.mxu0 0.0
        %703 = vmatpush1.msra.mxu0 0.0
        %704 = vmatprep.subr.mxu0 0.0
        %705 = vmatpush1.msra.mxu0 0.0
        %706 = vmatprep.subr.mxu0 0.0
        %707 = vmatpush1.msra.mxu0 0.0
        %708 = vmatprep.subr.mxu0 0.0
        %709 = vmatpush1.msra.mxu0 0.0
        %710 = vmatprep.subr.mxu0 0.0
        %711 = vmatpush1.msra.mxu0 0.0
        %712 = vmatprep.subr.mxu0 0.0
        %713 = vmatpush1.msra.mxu0 0.0
        %714 = vmatprep.subr.mxu0 0.0
        %715 = vmatpush1.msra.mxu0 0.0
        %716 = vmatprep.subr.mxu0 0.0
        %717 = vmatpush1.msra.mxu0 0.0
        %718 = vmatprep.subr.mxu0 0.0
        %719 = vmatpush1.msra.mxu0 0.0
        %720 = vmatprep.subr.mxu0 %v688
        %721 = vmatpush1.msra.mxu0 %v686
        %722 = vmatprep.subr.mxu0 0.0
        %723 = vmatpush2.msra.mxu0 0.0
        %724 = vmatprep.subr.mxu0 0.0
        %725 = vmatpush2.msra.mxu0 0.0
        %726 = vmatprep.subr.mxu0 0.0
        %727 = vmatpush2.msra.mxu0 0.0
        %728 = vmatprep.subr.mxu0 0.0
        %729 = vmatpush2.msra.mxu0 0.0
        %730 = vmatprep.subr.mxu0 0.0
        %731 = vmatpush2.msra.mxu0 0.0
        %732 = vmatprep.subr.mxu0 0.0
        %733 = vmatpush2.msra.mxu0 0.0
        %734 = vmatprep.subr.mxu0 0.0
        %735 = vmatpush2.msra.mxu0 0.0
        %736 = vmatprep.subr.mxu0 0.0
        %737 = vmatpush2.msra.mxu0 0.0
        %738 = vmatprep.subr.mxu0 0.0
        %739 = vmatpush2.msra.mxu0 0.0
        %740 = vmatprep.subr.mxu0 0.0
        %741 = vmatpush2.msra.mxu0 0.0
        %742 = vmatprep.subr.mxu0 0.0
        %743 = vmatpush2.msra.mxu0 0.0
        %744 = vmatprep.subr.mxu0 0.0
        %745 = vmatpush2.msra.mxu0 0.0
        %746 = vmatprep.subr.mxu0 0.0
        %747 = vmatpush2.msra.mxu0 0.0
        %748 = vmatprep.subr.mxu0 0.0
        %749 = vmatpush2.msra.mxu0 0.0
        %750 = vmatprep.subr.mxu0 0.0
        %751 = vmatpush2.msra.mxu0 0.0
        %752 = vmatprep.subr.mxu0 0.0
        %753 = vmatpush2.msra.mxu0 0.0
        %754 = vmatprep.mubr.f32.mxu0 0.0
        %755 = vmatmul.mubr.f32.gmra.mxu0 %v684
        %v756 = vpop.f32.mrf.mxu0
        %v757 = vadd.f32 0.0, %v756
        %v758 = vpop.f32.mrf.mxu0
        %v759 = vadd.f32 0.0, %v758
        %760 = vdwg.mxu0
        %v761 = vadd.f32 %v642, %v757
        %v762 = vadd.f32 %v644, %v759
        %v763 = vld [vmem:[#allocation2] sm:$0xff]
        %v764 = vld [vmem:[#allocation2 + $0x8] sm:$0xf]
        %s765 = scalar_lea.vmem %s1, 3
        %v766 = vld [vmem:[%s765] ss:$8 sm:$0x3]
        %v768 = vlaneseq
        %v769 = vshrl.u32 %v768, 7
        %v770 = vsub.s32 0, %v769
        %v771 = vrot.slane %v766, %v770
        %v772 = vlaneseq
        %v773 = vshrl.u32 %v772, 7
        %v774 = vsub.s32 1, %v773
        %v775 = vrot.slane %v766, %v774
        %v776 = vcombine.low %v771, %v775
        %777 = vrot.lane.b32.xlu0 %v776, 127
        %v778 = vpop.permute.xlu0 %777
        %v779 = vrot.slane %v778, 4
        %vm780 = vcmask 1039360
        %v781 = vsel %vm780, %v779, %v778
        %v784 = vmul.f32 %v763, %v781
        %v785 = vmul.f32 %v764, %v779
        %s786 = scalar_lea.vmem %s2, 24
        %v787 = vld [vmem:[%s786] sm:$0xff]
        %v790 = vcombine.high %v784, %v784
        %791 = vrot.lane.b32.xlu0 %v784, 1
        %v792 = vpop.permute.xlu0 %791
        %793 = vrot.lane.b32.xlu0 %v790, 1
        %v794 = vpop.permute.xlu0 %793
        %795 = vrot.lane.b32.xlu0 %v785, 1
        %v796 = vpop.permute.xlu0 %795
        %vm797 = vcmask 7168
        %v798 = vsel %vm797, %v792, %v794
        %v799 = vsel %vm797, %v794, %v796
        %v801 = vsel %vm476, %v787, 0
        %v803 = vsel %vm480, %v798, 0
        %v805 = vsel %vm480, %v799, 0
        %807 = vmatprep.subr.mxu0 0.0
        %808 = vmatpush1.msra.mxu0 0.0
        %809 = vmatprep.subr.mxu0 0.0
        %810 = vmatpush1.msra.mxu0 0.0
        %811 = vmatprep.subr.mxu0 0.0
        %812 = vmatpush1.msra.mxu0 0.0
        %813 = vmatprep.subr.mxu0 0.0
        %814 = vmatpush1.msra.mxu0 0.0
        %815 = vmatprep.subr.mxu0 0.0
        %816 = vmatpush1.msra.mxu0 0.0
        %817 = vmatprep.subr.mxu0 0.0
        %818 = vmatpush1.msra.mxu0 0.0
        %819 = vmatprep.subr.mxu0 0.0
        %820 = vmatpush1.msra.mxu0 0.0
        %821 = vmatprep.subr.mxu0 0.0
        %822 = vmatpush1.msra.mxu0 0.0
        %823 = vmatprep.subr.mxu0 0.0
        %824 = vmatpush1.msra.mxu0 0.0
        %825 = vmatprep.subr.mxu0 0.0
        %826 = vmatpush1.msra.mxu0 0.0
        %827 = vmatprep.subr.mxu0 0.0
        %828 = vmatpush1.msra.mxu0 0.0
        %829 = vmatprep.subr.mxu0 0.0
        %830 = vmatpush1.msra.mxu0 0.0
        %831 = vmatprep.subr.mxu0 0.0
        %832 = vmatpush1.msra.mxu0 0.0
        %833 = vmatprep.subr.mxu0 0.0
        %834 = vmatpush1.msra.mxu0 0.0
        %835 = vmatprep.subr.mxu0 0.0
        %836 = vmatpush1.msra.mxu0 0.0
        %837 = vmatprep.subr.mxu0 %v805
        %838 = vmatpush1.msra.mxu0 %v803
        %839 = vmatprep.subr.mxu0 0.0
        %840 = vmatpush2.msra.mxu0 0.0
        %841 = vmatprep.subr.mxu0 0.0
        %842 = vmatpush2.msra.mxu0 0.0
        %843 = vmatprep.subr.mxu0 0.0
        %844 = vmatpush2.msra.mxu0 0.0
        %845 = vmatprep.subr.mxu0 0.0
        %846 = vmatpush2.msra.mxu0 0.0
        %847 = vmatprep.subr.mxu0 0.0
        %848 = vmatpush2.msra.mxu0 0.0
        %849 = vmatprep.subr.mxu0 0.0
        %850 = vmatpush2.msra.mxu0 0.0
        %851 = vmatprep.subr.mxu0 0.0
        %852 = vmatpush2.msra.mxu0 0.0
        %853 = vmatprep.subr.mxu0 0.0
        %854 = vmatpush2.msra.mxu0 0.0
        %855 = vmatprep.subr.mxu0 0.0
        %856 = vmatpush2.msra.mxu0 0.0
        %857 = vmatprep.subr.mxu0 0.0
        %858 = vmatpush2.msra.mxu0 0.0
        %859 = vmatprep.subr.mxu0 0.0
        %860 = vmatpush2.msra.mxu0 0.0
        %861 = vmatprep.subr.mxu0 0.0
        %862 = vmatpush2.msra.mxu0 0.0
        %863 = vmatprep.subr.mxu0 0.0
        %864 = vmatpush2.msra.mxu0 0.0
        %865 = vmatprep.subr.mxu0 0.0
        %866 = vmatpush2.msra.mxu0 0.0
        %867 = vmatprep.subr.mxu0 0.0
        %868 = vmatpush2.msra.mxu0 0.0
        %869 = vmatprep.subr.mxu0 0.0
        %870 = vmatpush2.msra.mxu0 0.0
        %871 = vmatprep.mubr.f32.mxu0 0.0
        %872 = vmatmul.mubr.f32.gmra.mxu0 %v801
        %v873 = vpop.f32.mrf.mxu0
        %v874 = vadd.f32 0.0, %v873
        %v875 = vpop.f32.mrf.mxu0
        %v876 = vadd.f32 0.0, %v875
        %877 = vdwg.mxu0
        %v878 = vadd.f32 %v761, %v874
        %v879 = vadd.f32 %v762, %v876
        %v880 = vld [vmem:[#allocation2 + $0x4] sm:$0xff]
        %s881 = scalar_lea.vmem %s1, 4
        %v882 = vld [vmem:[%s881] ss:$8 sm:$0x3]
        %v884 = vlaneseq
        %v885 = vshrl.u32 %v884, 7
        %v886 = vsub.s32 0, %v885
        %v887 = vrot.slane %v882, %v886
        %v888 = vlaneseq
        %v889 = vshrl.u32 %v888, 7
        %v890 = vsub.s32 1, %v889
        %v891 = vrot.slane %v882, %v890
        %v892 = vcombine.low %v887, %v891
        %v894 = vmul.f32 %v880, %v892
        %s895 = scalar_lea.vmem %s2, 32
        %v896 = vld [vmem:[%s895] sm:$0xff]
        %v898 = vcombine.high %v894, %v894
        %v900 = vsel %vm476, %v896, 0
        %v902 = vsel %vm480, %v894, 0
        %v904 = vsel %vm480, %v898, 0
        %906 = vmatprep.subr.mxu0 0.0
        %907 = vmatpush1.msra.mxu0 0.0
        %908 = vmatprep.subr.mxu0 0.0
        %909 = vmatpush1.msra.mxu0 0.0
        %910 = vmatprep.subr.mxu0 0.0
        %911 = vmatpush1.msra.mxu0 0.0
        %912 = vmatprep.subr.mxu0 0.0
        %913 = vmatpush1.msra.mxu0 0.0
        %914 = vmatprep.subr.mxu0 0.0
        %915 = vmatpush1.msra.mxu0 0.0
        %916 = vmatprep.subr.mxu0 0.0
        %917 = vmatpush1.msra.mxu0 0.0
        %918 = vmatprep.subr.mxu0 0.0
        %919 = vmatpush1.msra.mxu0 0.0
        %920 = vmatprep.subr.mxu0 0.0
        %921 = vmatpush1.msra.mxu0 0.0
        %922 = vmatprep.subr.mxu0 0.0
        %923 = vmatpush1.msra.mxu0 0.0
        %924 = vmatprep.subr.mxu0 0.0
        %925 = vmatpush1.msra.mxu0 0.0
        %926 = vmatprep.subr.mxu0 0.0
        %927 = vmatpush1.msra.mxu0 0.0
        %928 = vmatprep.subr.mxu0 0.0
        %929 = vmatpush1.msra.mxu0 0.0
        %930 = vmatprep.subr.mxu0 0.0
        %931 = vmatpush1.msra.mxu0 0.0
        %932 = vmatprep.subr.mxu0 0.0
        %933 = vmatpush1.msra.mxu0 0.0
        %934 = vmatprep.subr.mxu0 0.0
        %935 = vmatpush1.msra.mxu0 0.0
        %936 = vmatprep.subr.mxu0 %v904
        %937 = vmatpush1.msra.mxu0 %v902
        %938 = vmatprep.subr.mxu0 0.0
        %939 = vmatpush2.msra.mxu0 0.0
        %940 = vmatprep.subr.mxu0 0.0
        %941 = vmatpush2.msra.mxu0 0.0
        %942 = vmatprep.subr.mxu0 0.0
        %943 = vmatpush2.msra.mxu0 0.0
        %944 = vmatprep.subr.mxu0 0.0
        %945 = vmatpush2.msra.mxu0 0.0
        %946 = vmatprep.subr.mxu0 0.0
        %947 = vmatpush2.msra.mxu0 0.0
        %948 = vmatprep.subr.mxu0 0.0
        %949 = vmatpush2.msra.mxu0 0.0
        %950 = vmatprep.subr.mxu0 0.0
        %951 = vmatpush2.msra.mxu0 0.0
        %952 = vmatprep.subr.mxu0 0.0
        %953 = vmatpush2.msra.mxu0 0.0
        %954 = vmatprep.subr.mxu0 0.0
        %955 = vmatpush2.msra.mxu0 0.0
        %956 = vmatprep.subr.mxu0 0.0
        %957 = vmatpush2.msra.mxu0 0.0
        %958 = vmatprep.subr.mxu0 0.0
        %959 = vmatpush2.msra.mxu0 0.0
        %960 = vmatprep.subr.mxu0 0.0
        %961 = vmatpush2.msra.mxu0 0.0
        %962 = vmatprep.subr.mxu0 0.0
        %963 = vmatpush2.msra.mxu0 0.0
        %964 = vmatprep.subr.mxu0 0.0
        %965 = vmatpush2.msra.mxu0 0.0
        %966 = vmatprep.subr.mxu0 0.0
        %967 = vmatpush2.msra.mxu0 0.0
        %968 = vmatprep.subr.mxu0 0.0
        %969 = vmatpush2.msra.mxu0 0.0
        %970 = vmatprep.mubr.f32.mxu0 0.0
        %971 = vmatmul.mubr.f32.gmra.mxu0 %v900
        %v972 = vpop.f32.mrf.mxu0
        %v973 = vadd.f32 0.0, %v972
        %v974 = vpop.f32.mrf.mxu0
        %v975 = vadd.f32 0.0, %v974
        %976 = vdwg.mxu0
        %v977 = vadd.f32 %v878, %v973
        %v978 = vadd.f32 %v879, %v975
        %v979 = vld [vmem:[#allocation2 + $0x4] sm:$0xff]
        %v980 = vld [vmem:[#allocation2 + $0xc] sm:$0xf]
        %s981 = scalar_lea.vmem %s1, 5
        %v982 = vld [vmem:[%s981] ss:$8 sm:$0x3]
        %v984 = vlaneseq
        %v985 = vshrl.u32 %v984, 7
        %v986 = vsub.s32 0, %v985
        %v987 = vrot.slane %v982, %v986
        %v988 = vlaneseq
        %v989 = vshrl.u32 %v988, 7
        %v990 = vsub.s32 1, %v989
        %v991 = vrot.slane %v982, %v990
        %v992 = vcombine.low %v987, %v991
        %993 = vrot.lane.b32.xlu0 %v992, 1
        %v994 = vpop.permute.xlu0 %993
        %v995 = vrot.slane %v994, 4
        %v996 = vsel %vm797, %v995, %v994
        %v999 = vmul.f32 %v979, %v996
        %v1000 = vmul.f32 %v980, %v995
        %s1001 = scalar_lea.vmem %s2, 40
        %v1002 = vld [vmem:[%s1001] sm:$0xff]
        %v1005 = vcombine.high %v999, %v999
        %1006 = vrot.lane.b32.xlu0 %v999, 127
        %v1007 = vpop.permute.xlu0 %1006
        %1008 = vrot.lane.b32.xlu0 %v1005, 127
        %v1009 = vpop.permute.xlu0 %1008
        %1010 = vrot.lane.b32.xlu0 %v1000, 127
        %v1011 = vpop.permute.xlu0 %1010
        %v1012 = vsel %vm780, %v1007, %v1009
        %v1013 = vsel %vm780, %v1009, %v1011
        %v1015 = vsel %vm476, %v1002, 0
        %v1017 = vsel %vm480, %v1012, 0
        %v1019 = vsel %vm480, %v1013, 0
        %1021 = vmatprep.subr.mxu0 0.0
        %1022 = vmatpush1.msra.mxu0 0.0
        %1023 = vmatprep.subr.mxu0 0.0
        %1024 = vmatpush1.msra.mxu0 0.0
        %1025 = vmatprep.subr.mxu0 0.0
        %1026 = vmatpush1.msra.mxu0 0.0
        %1027 = vmatprep.subr.mxu0 0.0
        %1028 = vmatpush1.msra.mxu0 0.0
        %1029 = vmatprep.subr.mxu0 0.0
        %1030 = vmatpush1.msra.mxu0 0.0
        %1031 = vmatprep.subr.mxu0 0.0
        %1032 = vmatpush1.msra.mxu0 0.0
        %1033 = vmatprep.subr.mxu0 0.0
        %1034 = vmatpush1.msra.mxu0 0.0
        %1035 = vmatprep.subr.mxu0 0.0
        %1036 = vmatpush1.msra.mxu0 0.0
        %1037 = vmatprep.subr.mxu0 0.0
        %1038 = vmatpush1.msra.mxu0 0.0
        %1039 = vmatprep.subr.mxu0 0.0
        %1040 = vmatpush1.msra.mxu0 0.0
        %1041 = vmatprep.subr.mxu0 0.0
        %1042 = vmatpush1.msra.mxu0 0.0
        %1043 = vmatprep.subr.mxu0 0.0
        %1044 = vmatpush1.msra.mxu0 0.0
        %1045 = vmatprep.subr.mxu0 0.0
        %1046 = vmatpush1.msra.mxu0 0.0
        %1047 = vmatprep.subr.mxu0 0.0
        %1048 = vmatpush1.msra.mxu0 0.0
        %1049 = vmatprep.subr.mxu0 0.0
        %1050 = vmatpush1.msra.mxu0 0.0
        %1051 = vmatprep.subr.mxu0 %v1019
        %1052 = vmatpush1.msra.mxu0 %v1017
        %1053 = vmatprep.subr.mxu0 0.0
        %1054 = vmatpush2.msra.mxu0 0.0
        %1055 = vmatprep.subr.mxu0 0.0
        %1056 = vmatpush2.msra.mxu0 0.0
        %1057 = vmatprep.subr.mxu0 0.0
        %1058 = vmatpush2.msra.mxu0 0.0
        %1059 = vmatprep.subr.mxu0 0.0
        %1060 = vmatpush2.msra.mxu0 0.0
        %1061 = vmatprep.subr.mxu0 0.0
        %1062 = vmatpush2.msra.mxu0 0.0
        %1063 = vmatprep.subr.mxu0 0.0
        %1064 = vmatpush2.msra.mxu0 0.0
        %1065 = vmatprep.subr.mxu0 0.0
        %1066 = vmatpush2.msra.mxu0 0.0
        %1067 = vmatprep.subr.mxu0 0.0
        %1068 = vmatpush2.msra.mxu0 0.0
        %1069 = vmatprep.subr.mxu0 0.0
        %1070 = vmatpush2.msra.mxu0 0.0
        %1071 = vmatprep.subr.mxu0 0.0
        %1072 = vmatpush2.msra.mxu0 0.0
        %1073 = vmatprep.subr.mxu0 0.0
        %1074 = vmatpush2.msra.mxu0 0.0
        %1075 = vmatprep.subr.mxu0 0.0
        %1076 = vmatpush2.msra.mxu0 0.0
        %1077 = vmatprep.subr.mxu0 0.0
        %1078 = vmatpush2.msra.mxu0 0.0
        %1079 = vmatprep.subr.mxu0 0.0
        %1080 = vmatpush2.msra.mxu0 0.0
        %1081 = vmatprep.subr.mxu0 0.0
        %1082 = vmatpush2.msra.mxu0 0.0
        %1083 = vmatprep.subr.mxu0 0.0
        %1084 = vmatpush2.msra.mxu0 0.0
        %1085 = vmatprep.mubr.f32.mxu0 0.0
        %1086 = vmatmul.mubr.f32.gmra.mxu0 %v1015
        %v1087 = vpop.f32.mrf.mxu0
        %v1088 = vadd.f32 0.0, %v1087
        %v1089 = vpop.f32.mrf.mxu0
        %v1090 = vadd.f32 0.0, %v1089
        %1091 = vdwg.mxu0
        %v1092 = vadd.f32 %v977, %v1088
        %v1093 = vadd.f32 %v978, %v1090
        %v1094 = vld [vmem:[#allocation2 + $0x4] sm:$0xff]
        %v1095 = vld [vmem:[#allocation2 + $0xc] sm:$0xf]
        %s1096 = scalar_lea.vmem %s1, 6
        %v1097 = vld [vmem:[%s1096] ss:$8 sm:$0x3]
        %v1099 = vlaneseq
        %v1100 = vshrl.u32 %v1099, 7
        %v1101 = vsub.s32 0, %v1100
        %v1102 = vrot.slane %v1097, %v1101
        %v1103 = vlaneseq
        %v1104 = vshrl.u32 %v1103, 7
        %v1105 = vsub.s32 1, %v1104
        %v1106 = vrot.slane %v1097, %v1105
        %v1107 = vcombine.low %v1102, %v1106
        %1108 = vrot.lane.b32.xlu0 %v1107, 15
        %v1109 = vpop.permute.xlu0 %1108
        %v1110 = vrot.slane %v1109, 4
        %v1111 = vsel %vm680, %v1110, %v1109
        %v1114 = vmul.f32 %v1094, %v1111
        %v1115 = vmul.f32 %v1095, %v1110
        %s1116 = scalar_lea.vmem %s2, 48
        %v1117 = vld [vmem:[%s1116] sm:$0xff]
        %v1120 = vcombine.high %v1114, %v1114
        %1121 = vrot.lane.b32.xlu0 %v1114, 113
        %v1122 = vpop.permute.xlu0 %1121
        %1123 = vrot.lane.b32.xlu0 %v1120, 113
        %v1124 = vpop.permute.xlu0 %1123
        %1125 = vrot.lane.b32.xlu0 %v1115, 113
        %v1126 = vpop.permute.xlu0 %1125
        %v1127 = vsel %vm663, %v1122, %v1124
        %v1128 = vsel %vm663, %v1124, %v1126
        %v1130 = vsel %vm476, %v1117, 0
        %v1132 = vsel %vm480, %v1127, 0
        %v1134 = vsel %vm480, %v1128, 0
        %1136 = vmatprep.subr.mxu0 0.0
        %1137 = vmatpush1.msra.mxu0 0.0
        %1138 = vmatprep.subr.mxu0 0.0
        %1139 = vmatpush1.msra.mxu0 0.0
        %1140 = vmatprep.subr.mxu0 0.0
        %1141 = vmatpush1.msra.mxu0 0.0
        %1142 = vmatprep.subr.mxu0 0.0
        %1143 = vmatpush1.msra.mxu0 0.0
        %1144 = vmatprep.subr.mxu0 0.0
        %1145 = vmatpush1.msra.mxu0 0.0
        %1146 = vmatprep.subr.mxu0 0.0
        %1147 = vmatpush1.msra.mxu0 0.0
        %1148 = vmatprep.subr.mxu0 0.0
        %1149 = vmatpush1.msra.mxu0 0.0
        %1150 = vmatprep.subr.mxu0 0.0
        %1151 = vmatpush1.msra.mxu0 0.0
        %1152 = vmatprep.subr.mxu0 0.0
        %1153 = vmatpush1.msra.mxu0 0.0
        %1154 = vmatprep.subr.mxu0 0.0
        %1155 = vmatpush1.msra.mxu0 0.0
        %1156 = vmatprep.subr.mxu0 0.0
        %1157 = vmatpush1.msra.mxu0 0.0
        %1158 = vmatprep.subr.mxu0 0.0
        %1159 = vmatpush1.msra.mxu0 0.0
        %1160 = vmatprep.subr.mxu0 0.0
        %1161 = vmatpush1.msra.mxu0 0.0
        %1162 = vmatprep.subr.mxu0 0.0
        %1163 = vmatpush1.msra.mxu0 0.0
        %1164 = vmatprep.subr.mxu0 0.0
        %1165 = vmatpush1.msra.mxu0 0.0
        %1166 = vmatprep.subr.mxu0 %v1134
        %1167 = vmatpush1.msra.mxu0 %v1132
        %1168 = vmatprep.subr.mxu0 0.0
        %1169 = vmatpush2.msra.mxu0 0.0
        %1170 = vmatprep.subr.mxu0 0.0
        %1171 = vmatpush2.msra.mxu0 0.0
        %1172 = vmatprep.subr.mxu0 0.0
        %1173 = vmatpush2.msra.mxu0 0.0
        %1174 = vmatprep.subr.mxu0 0.0
        %1175 = vmatpush2.msra.mxu0 0.0
        %1176 = vmatprep.subr.mxu0 0.0
        %1177 = vmatpush2.msra.mxu0 0.0
        %1178 = vmatprep.subr.mxu0 0.0
        %1179 = vmatpush2.msra.mxu0 0.0
        %1180 = vmatprep.subr.mxu0 0.0
        %1181 = vmatpush2.msra.mxu0 0.0
        %1182 = vmatprep.subr.mxu0 0.0
        %1183 = vmatpush2.msra.mxu0 0.0
        %1184 = vmatprep.subr.mxu0 0.0
        %1185 = vmatpush2.msra.mxu0 0.0
        %1186 = vmatprep.subr.mxu0 0.0
        %1187 = vmatpush2.msra.mxu0 0.0
        %1188 = vmatprep.subr.mxu0 0.0
        %1189 = vmatpush2.msra.mxu0 0.0
        %1190 = vmatprep.subr.mxu0 0.0
        %1191 = vmatpush2.msra.mxu0 0.0
        %1192 = vmatprep.subr.mxu0 0.0
        %1193 = vmatpush2.msra.mxu0 0.0
        %1194 = vmatprep.subr.mxu0 0.0
        %1195 = vmatpush2.msra.mxu0 0.0
        %1196 = vmatprep.subr.mxu0 0.0
        %1197 = vmatpush2.msra.mxu0 0.0
        %1198 = vmatprep.subr.mxu0 0.0
        %1199 = vmatpush2.msra.mxu0 0.0
        %1200 = vmatprep.mubr.f32.mxu0 0.0
        %1201 = vmatmul.mubr.f32.gmra.mxu0 %v1130
        %v1202 = vpop.f32.mrf.mxu0
        %v1203 = vadd.f32 0.0, %v1202
        %v1204 = vpop.f32.mrf.mxu0
        %v1205 = vadd.f32 0.0, %v1204
        %1206 = vdwg.mxu0
        %v1207 = vadd.f32 %v1092, %v1203
        %v1208 = vadd.f32 %v1093, %v1205
        %v1209 = vld [vmem:[#allocation2 + $0x4] sm:$0xff]
        %v1210 = vld [vmem:[#allocation2 + $0xc] sm:$0xf]
        %s1211 = scalar_lea.vmem %s1, 7
        %v1212 = vld [vmem:[%s1211] ss:$8 sm:$0x3]
        %v1214 = vlaneseq
        %v1215 = vshrl.u32 %v1214, 7
        %v1216 = vsub.s32 0, %v1215
        %v1217 = vrot.slane %v1212, %v1216
        %v1218 = vlaneseq
        %v1219 = vshrl.u32 %v1218, 7
        %v1220 = vsub.s32 1, %v1219
        %v1221 = vrot.slane %v1212, %v1220
        %v1222 = vcombine.low %v1217, %v1221
        %1223 = vrot.lane.b32.xlu0 %v1222, 16
        %v1224 = vpop.permute.xlu0 %1223
        %v1225 = vrot.slane %v1224, 4
        %v1226 = vsel %vm473, %v1225, %v1224
        %v1229 = vmul.f32 %v1209, %v1226
        %v1230 = vmul.f32 %v1210, %v1225
        %s1231 = scalar_lea.vmem %s2, 56
        %v1232 = vld [vmem:[%s1231] sm:$0xff]
        %v1235 = vcombine.high %v1229, %v1229
        %1236 = vrot.lane.b32.xlu0 %v1229, 112
        %v1237 = vpop.permute.xlu0 %1236
        %1238 = vrot.lane.b32.xlu0 %v1235, 112
        %v1239 = vpop.permute.xlu0 %1238
        %1240 = vrot.lane.b32.xlu0 %v1230, 112
        %v1241 = vpop.permute.xlu0 %1240
        %v1242 = vsel %vm456, %v1237, %v1239
        %v1243 = vsel %vm456, %v1239, %v1241
        %v1245 = vsel %vm476, %v1232, 0
        %v1247 = vsel %vm480, %v1242, 0
        %v1249 = vsel %vm480, %v1243, 0
        %1251 = vmatprep.subr.mxu0 0.0
        %1252 = vmatpush1.msra.mxu0 0.0
        %1253 = vmatprep.subr.mxu0 0.0
        %1254 = vmatpush1.msra.mxu0 0.0
        %1255 = vmatprep.subr.mxu0 0.0
        %1256 = vmatpush1.msra.mxu0 0.0
        %1257 = vmatprep.subr.mxu0 0.0
        %1258 = vmatpush1.msra.mxu0 0.0
        %1259 = vmatprep.subr.mxu0 0.0
        %1260 = vmatpush1.msra.mxu0 0.0
        %1261 = vmatprep.subr.mxu0 0.0
        %1262 = vmatpush1.msra.mxu0 0.0
        %1263 = vmatprep.subr.mxu0 0.0
        %1264 = vmatpush1.msra.mxu0 0.0
        %1265 = vmatprep.subr.mxu0 0.0
        %1266 = vmatpush1.msra.mxu0 0.0
        %1267 = vmatprep.subr.mxu0 0.0
        %1268 = vmatpush1.msra.mxu0 0.0
        %1269 = vmatprep.subr.mxu0 0.0
        %1270 = vmatpush1.msra.mxu0 0.0
        %1271 = vmatprep.subr.mxu0 0.0
        %1272 = vmatpush1.msra.mxu0 0.0
        %1273 = vmatprep.subr.mxu0 0.0
        %1274 = vmatpush1.msra.mxu0 0.0
        %1275 = vmatprep.subr.mxu0 0.0
        %1276 = vmatpush1.msra.mxu0 0.0
        %1277 = vmatprep.subr.mxu0 0.0
        %1278 = vmatpush1.msra.mxu0 0.0
        %1279 = vmatprep.subr.mxu0 0.0
        %1280 = vmatpush1.msra.mxu0 0.0
        %1281 = vmatprep.subr.mxu0 %v1249
        %1282 = vmatpush1.msra.mxu0 %v1247
        %1283 = vmatprep.subr.mxu0 0.0
        %1284 = vmatpush2.msra.mxu0 0.0
        %1285 = vmatprep.subr.mxu0 0.0
        %1286 = vmatpush2.msra.mxu0 0.0
        %1287 = vmatprep.subr.mxu0 0.0
        %1288 = vmatpush2.msra.mxu0 0.0
        %1289 = vmatprep.subr.mxu0 0.0
        %1290 = vmatpush2.msra.mxu0 0.0
        %1291 = vmatprep.subr.mxu0 0.0
        %1292 = vmatpush2.msra.mxu0 0.0
        %1293 = vmatprep.subr.mxu0 0.0
        %1294 = vmatpush2.msra.mxu0 0.0
        %1295 = vmatprep.subr.mxu0 0.0
        %1296 = vmatpush2.msra.mxu0 0.0
        %1297 = vmatprep.subr.mxu0 0.0
        %1298 = vmatpush2.msra.mxu0 0.0
        %1299 = vmatprep.subr.mxu0 0.0
        %1300 = vmatpush2.msra.mxu0 0.0
        %1301 = vmatprep.subr.mxu0 0.0
        %1302 = vmatpush2.msra.mxu0 0.0
        %1303 = vmatprep.subr.mxu0 0.0
        %1304 = vmatpush2.msra.mxu0 0.0
        %1305 = vmatprep.subr.mxu0 0.0
        %1306 = vmatpush2.msra.mxu0 0.0
        %1307 = vmatprep.subr.mxu0 0.0
        %1308 = vmatpush2.msra.mxu0 0.0
        %1309 = vmatprep.subr.mxu0 0.0
        %1310 = vmatpush2.msra.mxu0 0.0
        %1311 = vmatprep.subr.mxu0 0.0
        %1312 = vmatpush2.msra.mxu0 0.0
        %1313 = vmatprep.subr.mxu0 0.0
        %1314 = vmatpush2.msra.mxu0 0.0
        %1315 = vmatprep.mubr.f32.mxu0 0.0
        %1316 = vmatmul.mubr.f32.gmra.mxu0 %v1245
        %v1317 = vpop.f32.mrf.mxu0
        %v1318 = vadd.f32 0.0, %v1317
        %v1319 = vpop.f32.mrf.mxu0
        %v1320 = vadd.f32 0.0, %v1319
        %1321 = vdwg.mxu0
        %v1322 = vadd.f32 %v1207, %v1318
        %v1323 = vadd.f32 %v1208, %v1320
        %v1324 = vld [vmem:[#allocation2 + $0x4] sm:$0xff]
        %v1325 = vld [vmem:[#allocation2 + $0xc] sm:$0xf]
        %s1326 = scalar_lea.vmem %s1, 16
        %v1327 = vld [vmem:[%s1326] ss:$8 sm:$0x3]
        %v1329 = vlaneseq
        %v1330 = vshrl.u32 %v1329, 7
        %v1331 = vsub.s32 0, %v1330
        %v1332 = vrot.slane %v1327, %v1331
        %v1333 = vlaneseq
        %v1334 = vshrl.u32 %v1333, 7
        %v1335 = vsub.s32 1, %v1334
        %v1336 = vrot.slane %v1327, %v1335
        %v1337 = vcombine.low %v1332, %v1336
        %1338 = vrot.lane.b32.xlu0 %v1337, 17
        %v1339 = vpop.permute.xlu0 %1338
        %v1340 = vrot.slane %v1339, 4
        %v1341 = vsel %vm565, %v1340, %v1339
        %v1344 = vmul.f32 %v1324, %v1341
        %v1345 = vmul.f32 %v1325, %v1340
        %s1346 = scalar_lea.vmem %s2, 64
        %v1347 = vld [vmem:[%s1346] sm:$0xff]
        %v1350 = vcombine.high %v1344, %v1344
        %1351 = vrot.lane.b32.xlu0 %v1344, 111
        %v1352 = vpop.permute.xlu0 %1351
        %1353 = vrot.lane.b32.xlu0 %v1350, 111
        %v1354 = vpop.permute.xlu0 %1353
        %1355 = vrot.lane.b32.xlu0 %v1345, 111
        %v1356 = vpop.permute.xlu0 %1355
        %v1357 = vsel %vm434, %v1352, %v1354
        %v1358 = vsel %vm434, %v1354, %v1356
        %v1360 = vsel %vm476, %v1347, 0
        %v1362 = vsel %vm480, %v1357, 0
        %v1364 = vsel %vm480, %v1358, 0
        %1366 = vmatprep.subr.mxu0 0.0
        %1367 = vmatpush1.msra.mxu0 0.0
        %1368 = vmatprep.subr.mxu0 0.0
        %1369 = vmatpush1.msra.mxu0 0.0
        %1370 = vmatprep.subr.mxu0 0.0
        %1371 = vmatpush1.msra.mxu0 0.0
        %1372 = vmatprep.subr.mxu0 0.0
        %1373 = vmatpush1.msra.mxu0 0.0
        %1374 = vmatprep.subr.mxu0 0.0
        %1375 = vmatpush1.msra.mxu0 0.0
        %1376 = vmatprep.subr.mxu0 0.0
        %1377 = vmatpush1.msra.mxu0 0.0
        %1378 = vmatprep.subr.mxu0 0.0
        %1379 = vmatpush1.msra.mxu0 0.0
        %1380 = vmatprep.subr.mxu0 0.0
        %1381 = vmatpush1.msra.mxu0 0.0
        %1382 = vmatprep.subr.mxu0 0.0
        %1383 = vmatpush1.msra.mxu0 0.0
        %1384 = vmatprep.subr.mxu0 0.0
        %1385 = vmatpush1.msra.mxu0 0.0
        %1386 = vmatprep.subr.mxu0 0.0
        %1387 = vmatpush1.msra.mxu0 0.0
        %1388 = vmatprep.subr.mxu0 0.0
        %1389 = vmatpush1.msra.mxu0 0.0
        %1390 = vmatprep.subr.mxu0 0.0
        %1391 = vmatpush1.msra.mxu0 0.0
        %1392 = vmatprep.subr.mxu0 0.0
        %1393 = vmatpush1.msra.mxu0 0.0
        %1394 = vmatprep.subr.mxu0 0.0
        %1395 = vmatpush1.msra.mxu0 0.0
        %1396 = vmatprep.subr.mxu0 %v1364
        %1397 = vmatpush1.msra.mxu0 %v1362
        %1398 = vmatprep.subr.mxu0 0.0
        %1399 = vmatpush2.msra.mxu0 0.0
        %1400 = vmatprep.subr.mxu0 0.0
        %1401 = vmatpush2.msra.mxu0 0.0
        %1402 = vmatprep.subr.mxu0 0.0
        %1403 = vmatpush2.msra.mxu0 0.0
        %1404 = vmatprep.subr.mxu0 0.0
        %1405 = vmatpush2.msra.mxu0 0.0
        %1406 = vmatprep.subr.mxu0 0.0
        %1407 = vmatpush2.msra.mxu0 0.0
        %1408 = vmatprep.subr.mxu0 0.0
        %1409 = vmatpush2.msra.mxu0 0.0
        %1410 = vmatprep.subr.mxu0 0.0
        %1411 = vmatpush2.msra.mxu0 0.0
        %1412 = vmatprep.subr.mxu0 0.0
        %1413 = vmatpush2.msra.mxu0 0.0
        %1414 = vmatprep.subr.mxu0 0.0
        %1415 = vmatpush2.msra.mxu0 0.0
        %1416 = vmatprep.subr.mxu0 0.0
        %1417 = vmatpush2.msra.mxu0 0.0
        %1418 = vmatprep.subr.mxu0 0.0
        %1419 = vmatpush2.msra.mxu0 0.0
        %1420 = vmatprep.subr.mxu0 0.0
        %1421 = vmatpush2.msra.mxu0 0.0
        %1422 = vmatprep.subr.mxu0 0.0
        %1423 = vmatpush2.msra.mxu0 0.0
        %1424 = vmatprep.subr.mxu0 0.0
        %1425 = vmatpush2.msra.mxu0 0.0
        %1426 = vmatprep.subr.mxu0 0.0
        %1427 = vmatpush2.msra.mxu0 0.0
        %1428 = vmatprep.subr.mxu0 0.0
        %1429 = vmatpush2.msra.mxu0 0.0
        %1430 = vmatprep.mubr.f32.mxu0 0.0
        %1431 = vmatmul.mubr.f32.gmra.mxu0 %v1360
        %v1432 = vpop.f32.mrf.mxu0
        %v1433 = vadd.f32 0.0, %v1432
        %v1434 = vpop.f32.mrf.mxu0
        %v1435 = vadd.f32 0.0, %v1434
        %1436 = vdwg.mxu0
        %v1437 = vadd.f32 %v1322, %v1433
        %v1438 = vadd.f32 %v1323, %v1435
        %v1439 = vld [vmem:[%s3] sm:$0xff]
        %1441 = vset.pattern.permute.xlu0 0
        %1442 = vperm.xlu0 %1441, %v1439
        %v1443 = vpop.permute.xlu0 %1442
        %v1445 = vadd.f32 %v1437, %v1443
        %v1446 = vadd.f32 %v1438, %v1443
        %v1447 = vmax.f32 %v1445, 0.0
        %v1448 = vmax.f32 %v1446, 0.0
        %v1449 = vld [vmem:[%s6] sm:$0xff]
        %1451 = vset.pattern.permute.xlu0 0
        %1452 = vperm.xlu0 %1451, %v1449
        %v1453 = vpop.permute.xlu0 %1452
        %v1455 = vmul.f32 %v1447, %v1453
        %v1456 = vmul.f32 %v1448, %v1453
        %v1457 = vld [vmem:[%s7] sm:$0xff]
        %1459 = vset.pattern.permute.xlu0 0
        %1460 = vperm.xlu0 %1459, %v1457
        %v1461 = vpop.permute.xlu0 %1460
        %v1463 = vadd.f32 %v1455, %v1461
        %v1464 = vadd.f32 %v1456, %v1461
        %1465 = vst [vmem:[#allocation3] sm:$0xff] 0.0
        %1466 = vst [vmem:[#allocation3 + $0x8] sm:$0xff] 0.0
        %1467 = vst [vmem:[#allocation3 + $0x10] sm:$0xff] 0.0
        %1468 = vst [vmem:[#allocation3 + $0x18] sm:$0xff] 0.0
        %1469 = vst [vmem:[#allocation3 + $0x8] sm:$0xff] %v1463
        %1470 = vst [vmem:[#allocation3 + $0x10] sm:$0xff] %v1464
        %v1471 = vld [vmem:[#allocation3] sm:$0xff]
        %v1472 = vld [vmem:[#allocation3 + $0x8] sm:$0xff]
        %v1473 = vld [vmem:[#allocation3 + $0x10] sm:$0xff]
        %v1474 = vld [vmem:[%s1] ss:$8 sm:$0x3]
        %v1476 = vlaneseq
        %v1477 = vshrl.u32 %v1476, 7
        %v1478 = vsub.s32 0, %v1477
        %v1479 = vrot.slane %v1474, %v1478
        %v1480 = vlaneseq
        %v1481 = vshrl.u32 %v1480, 7
        %v1482 = vsub.s32 1, %v1481
        %v1483 = vrot.slane %v1474, %v1482
        %1484 = vrot.lane.b32.xlu0 %v1479, 111
        %v1485 = vpop.permute.xlu0 %1484
        %1486 = vrot.lane.b32.xlu0 %v1483, 111
        %v1487 = vpop.permute.xlu0 %1486
        %v1488 = vsel %vm434, %v1485, %v1487
        %v1492 = vmul.f32 %v1471, %v1485
        %v1493 = vmul.f32 %v1472, %v1488
        %v1494 = vmul.f32 %v1473, %v1487
        %v1495 = vld [vmem:[%s8] sm:$0xff]
        %v1496 = vld [vmem:[%s441] ss:$8 sm:$0x3]
        %v1498 = vlaneseq
        %v1499 = vshrl.u32 %v1498, 7
        %v1500 = vsub.s32 0, %v1499
        %v1501 = vrot.slane %v1496, %v1500
        %v1502 = vlaneseq
        %v1503 = vshrl.u32 %v1502, 7
        %v1504 = vsub.s32 1, %v1503
        %v1505 = vrot.slane %v1496, %v1504
        %1506 = vrot.lane.b32.xlu0 %v1501, 112
        %v1507 = vpop.permute.xlu0 %1506
        %1508 = vrot.lane.b32.xlu0 %v1505, 112
        %v1509 = vpop.permute.xlu0 %1508
        %v1510 = vsel %vm456, %v1507, %v1509
        %v1514 = vmul.f32 %v1471, %v1507
        %v1515 = vmul.f32 %v1472, %v1510
        %v1516 = vmul.f32 %v1473, %v1509
        %s1517 = scalar_lea.vmem %s8, 8
        %v1518 = vld [vmem:[%s1517] sm:$0xff]
        %1522 = vrot.lane.b32.xlu0 %v1514, 16
        %v1523 = vpop.permute.xlu0 %1522
        %1524 = vrot.lane.b32.xlu0 %v1515, 16
        %v1525 = vpop.permute.xlu0 %1524
        %1526 = vrot.lane.b32.xlu0 %v1516, 16
        %v1527 = vpop.permute.xlu0 %1526
        %v1528 = vsel %vm473, %v1523, %v1525
        %v1529 = vsel %vm473, %v1525, %v1527
        %vm1532 = vcmask 64512
        %v1534 = vsel %vm1532, %v1518, 0
        %1536 = vmatprep.subr.mxu0 0.0
        %1537 = vmatpush1.msra.mxu0 0.0
        %1538 = vmatprep.subr.mxu0 0.0
        %1539 = vmatpush1.msra.mxu0 0.0
        %1540 = vmatprep.subr.mxu0 0.0
        %1541 = vmatpush1.msra.mxu0 0.0
        %1542 = vmatprep.subr.mxu0 0.0
        %1543 = vmatpush1.msra.mxu0 0.0
        %1544 = vmatprep.subr.mxu0 0.0
        %1545 = vmatpush1.msra.mxu0 0.0
        %1546 = vmatprep.subr.mxu0 0.0
        %1547 = vmatpush1.msra.mxu0 0.0
        %1548 = vmatprep.subr.mxu0 0.0
        %1549 = vmatpush1.msra.mxu0 0.0
        %1550 = vmatprep.subr.mxu0 0.0
        %1551 = vmatpush1.msra.mxu0 0.0
        %1552 = vmatprep.subr.mxu0 0.0
        %1553 = vmatpush1.msra.mxu0 0.0
        %1554 = vmatprep.subr.mxu0 0.0
        %1555 = vmatpush1.msra.mxu0 0.0
        %1556 = vmatprep.subr.mxu0 0.0
        %1557 = vmatpush1.msra.mxu0 0.0
        %1558 = vmatprep.subr.mxu0 0.0
        %1559 = vmatpush1.msra.mxu0 0.0
        %1560 = vmatprep.subr.mxu0 0.0
        %1561 = vmatpush1.msra.mxu0 0.0
        %1562 = vmatprep.subr.mxu0 0.0
        %1563 = vmatpush1.msra.mxu0 0.0
        %1564 = vmatprep.subr.mxu0 0.0
        %1565 = vmatpush1.msra.mxu0 0.0
        %1566 = vmatprep.subr.mxu0 %v1529
        %1567 = vmatpush1.msra.mxu0 %v1528
        %1568 = vmatprep.subr.mxu0 0.0
        %1569 = vmatpush2.msra.mxu0 0.0
        %1570 = vmatprep.subr.mxu0 0.0
        %1571 = vmatpush2.msra.mxu0 0.0
        %1572 = vmatprep.subr.mxu0 0.0
        %1573 = vmatpush2.msra.mxu0 0.0
        %1574 = vmatprep.subr.mxu0 0.0
        %1575 = vmatpush2.msra.mxu0 0.0
        %1576 = vmatprep.subr.mxu0 0.0
        %1577 = vmatpush2.msra.mxu0 0.0
        %1578 = vmatprep.subr.mxu0 0.0
        %1579 = vmatpush2.msra.mxu0 0.0
        %1580 = vmatprep.subr.mxu0 0.0
        %1581 = vmatpush2.msra.mxu0 0.0
        %1582 = vmatprep.subr.mxu0 0.0
        %1583 = vmatpush2.msra.mxu0 0.0
        %1584 = vmatprep.subr.mxu0 0.0
        %1585 = vmatpush2.msra.mxu0 0.0
        %1586 = vmatprep.subr.mxu0 0.0
        %1587 = vmatpush2.msra.mxu0 0.0
        %1588 = vmatprep.subr.mxu0 0.0
        %1589 = vmatpush2.msra.mxu0 0.0
        %1590 = vmatprep.subr.mxu0 0.0
        %1591 = vmatpush2.msra.mxu0 0.0
        %1592 = vmatprep.subr.mxu0 0.0
        %1593 = vmatpush2.msra.mxu0 0.0
        %1594 = vmatprep.subr.mxu0 0.0
        %1595 = vmatpush2.msra.mxu0 0.0
        %1596 = vmatprep.subr.mxu0 0.0
        %1597 = vmatpush2.msra.mxu0 0.0
        %1598 = vmatprep.subr.mxu0 0.0
        %1599 = vmatpush2.msra.mxu0 0.0
        %1600 = vmatprep.mubr.f32.mxu0 0.0
        %1601 = vmatmul.mubr.f32.gmra.mxu0 %v1534
        %v1602 = vpop.f32.mrf.mxu0
        %v1603 = vadd.f32 0.0, %v1602
        %v1604 = vpop.f32.mrf.mxu0
        %v1605 = vadd.f32 0.0, %v1604
        %1606 = vdwg.mxu0
        %1610 = vrot.lane.b32.xlu0 %v1492, 17
        %v1611 = vpop.permute.xlu0 %1610
        %1612 = vrot.lane.b32.xlu0 %v1493, 17
        %v1613 = vpop.permute.xlu0 %1612
        %1614 = vrot.lane.b32.xlu0 %v1494, 17
        %v1615 = vpop.permute.xlu0 %1614
        %v1616 = vsel %vm565, %v1611, %v1613
        %v1617 = vsel %vm565, %v1613, %v1615
        %v1621 = vsel %vm1532, %v1495, 0
        %1623 = vmatprep.subr.mxu0 0.0
        %1624 = vmatpush1.msra.mxu0 0.0
        %1625 = vmatprep.subr.mxu0 0.0
        %1626 = vmatpush1.msra.mxu0 0.0
        %1627 = vmatprep.subr.mxu0 0.0
        %1628 = vmatpush1.msra.mxu0 0.0
        %1629 = vmatprep.subr.mxu0 0.0
        %1630 = vmatpush1.msra.mxu0 0.0
        %1631 = vmatprep.subr.mxu0 0.0
        %1632 = vmatpush1.msra.mxu0 0.0
        %1633 = vmatprep.subr.mxu0 0.0
        %1634 = vmatpush1.msra.mxu0 0.0
        %1635 = vmatprep.subr.mxu0 0.0
        %1636 = vmatpush1.msra.mxu0 0.0
        %1637 = vmatprep.subr.mxu0 0.0
        %1638 = vmatpush1.msra.mxu0 0.0
        %1639 = vmatprep.subr.mxu0 0.0
        %1640 = vmatpush1.msra.mxu0 0.0
        %1641 = vmatprep.subr.mxu0 0.0
        %1642 = vmatpush1.msra.mxu0 0.0
        %1643 = vmatprep.subr.mxu0 0.0
        %1644 = vmatpush1.msra.mxu0 0.0
        %1645 = vmatprep.subr.mxu0 0.0
        %1646 = vmatpush1.msra.mxu0 0.0
        %1647 = vmatprep.subr.mxu0 0.0
        %1648 = vmatpush1.msra.mxu0 0.0
        %1649 = vmatprep.subr.mxu0 0.0
        %1650 = vmatpush1.msra.mxu0 0.0
        %1651 = vmatprep.subr.mxu0 0.0
        %1652 = vmatpush1.msra.mxu0 0.0
        %1653 = vmatprep.subr.mxu0 %v1617
        %1654 = vmatpush1.msra.mxu0 %v1616
        %1655 = vmatprep.subr.mxu0 0.0
        %1656 = vmatpush2.msra.mxu0 0.0
        %1657 = vmatprep.subr.mxu0 0.0
        %1658 = vmatpush2.msra.mxu0 0.0
        %1659 = vmatprep.subr.mxu0 0.0
        %1660 = vmatpush2.msra.mxu0 0.0
        %1661 = vmatprep.subr.mxu0 0.0
        %1662 = vmatpush2.msra.mxu0 0.0
        %1663 = vmatprep.subr.mxu0 0.0
        %1664 = vmatpush2.msra.mxu0 0.0
        %1665 = vmatprep.subr.mxu0 0.0
        %1666 = vmatpush2.msra.mxu0 0.0
        %1667 = vmatprep.subr.mxu0 0.0
        %1668 = vmatpush2.msra.mxu0 0.0
        %1669 = vmatprep.subr.mxu0 0.0
        %1670 = vmatpush2.msra.mxu0 0.0
        %1671 = vmatprep.subr.mxu0 0.0
        %1672 = vmatpush2.msra.mxu0 0.0
        %1673 = vmatprep.subr.mxu0 0.0
        %1674 = vmatpush2.msra.mxu0 0.0
        %1675 = vmatprep.subr.mxu0 0.0
        %1676 = vmatpush2.msra.mxu0 0.0
        %1677 = vmatprep.subr.mxu0 0.0
        %1678 = vmatpush2.msra.mxu0 0.0
        %1679 = vmatprep.subr.mxu0 0.0
        %1680 = vmatpush2.msra.mxu0 0.0
        %1681 = vmatprep.subr.mxu0 0.0
        %1682 = vmatpush2.msra.mxu0 0.0
        %1683 = vmatprep.subr.mxu0 0.0
        %1684 = vmatpush2.msra.mxu0 0.0
        %1685 = vmatprep.subr.mxu0 0.0
        %1686 = vmatpush2.msra.mxu0 0.0
        %1687 = vmatprep.mubr.f32.mxu0 0.0
        %1688 = vmatmul.mubr.f32.gmra.mxu0 %v1621
        %v1689 = vpop.f32.mrf.mxu0
        %v1690 = vadd.f32 %v1603, %v1689
        %v1691 = vpop.f32.mrf.mxu0
        %v1692 = vadd.f32 %v1605, %v1691
        %1693 = vdwg.mxu0
        %v1694 = vld [vmem:[%s765] ss:$8 sm:$0x3]
        %v1696 = vlaneseq
        %v1697 = vshrl.u32 %v1696, 7
        %v1698 = vsub.s32 0, %v1697
        %v1699 = vrot.slane %v1694, %v1698
        %v1700 = vlaneseq
        %v1701 = vshrl.u32 %v1700, 7
        %v1702 = vsub.s32 1, %v1701
        %v1703 = vrot.slane %v1694, %v1702
        %1704 = vrot.lane.b32.xlu0 %v1699, 127
        %v1705 = vpop.permute.xlu0 %1704
        %1706 = vrot.lane.b32.xlu0 %v1703, 127
        %v1707 = vpop.permute.xlu0 %1706
        %v1708 = vsel %vm780, %v1705, %v1707
        %v1712 = vmul.f32 %v1471, %v1705
        %v1713 = vmul.f32 %v1472, %v1708
        %v1714 = vmul.f32 %v1473, %v1707
        %s1715 = scalar_lea.vmem %s8, 16
        %v1716 = vld [vmem:[%s1715] sm:$0xff]
        %1720 = vrot.lane.b32.xlu0 %v1712, 1
        %v1721 = vpop.permute.xlu0 %1720
        %1722 = vrot.lane.b32.xlu0 %v1713, 1
        %v1723 = vpop.permute.xlu0 %1722
        %1724 = vrot.lane.b32.xlu0 %v1714, 1
        %v1725 = vpop.permute.xlu0 %1724
        %v1726 = vsel %vm797, %v1721, %v1723
        %v1727 = vsel %vm797, %v1723, %v1725
        %v1731 = vsel %vm1532, %v1716, 0
        %1733 = vmatprep.subr.mxu0 0.0
        %1734 = vmatpush1.msra.mxu0 0.0
        %1735 = vmatprep.subr.mxu0 0.0
        %1736 = vmatpush1.msra.mxu0 0.0
        %1737 = vmatprep.subr.mxu0 0.0
        %1738 = vmatpush1.msra.mxu0 0.0
        %1739 = vmatprep.subr.mxu0 0.0
        %1740 = vmatpush1.msra.mxu0 0.0
        %1741 = vmatprep.subr.mxu0 0.0
        %1742 = vmatpush1.msra.mxu0 0.0
        %1743 = vmatprep.subr.mxu0 0.0
        %1744 = vmatpush1.msra.mxu0 0.0
        %1745 = vmatprep.subr.mxu0 0.0
        %1746 = vmatpush1.msra.mxu0 0.0
        %1747 = vmatprep.subr.mxu0 0.0
        %1748 = vmatpush1.msra.mxu0 0.0
        %1749 = vmatprep.subr.mxu0 0.0
        %1750 = vmatpush1.msra.mxu0 0.0
        %1751 = vmatprep.subr.mxu0 0.0
        %1752 = vmatpush1.msra.mxu0 0.0
        %1753 = vmatprep.subr.mxu0 0.0
        %1754 = vmatpush1.msra.mxu0 0.0
        %1755 = vmatprep.subr.mxu0 0.0
        %1756 = vmatpush1.msra.mxu0 0.0
        %1757 = vmatprep.subr.mxu0 0.0
        %1758 = vmatpush1.msra.mxu0 0.0
        %1759 = vmatprep.subr.mxu0 0.0
        %1760 = vmatpush1.msra.mxu0 0.0
        %1761 = vmatprep.subr.mxu0 0.0
        %1762 = vmatpush1.msra.mxu0 0.0
        %1763 = vmatprep.subr.mxu0 %v1727
        %1764 = vmatpush1.msra.mxu0 %v1726
        %1765 = vmatprep.subr.mxu0 0.0
        %1766 = vmatpush2.msra.mxu0 0.0
        %1767 = vmatprep.subr.mxu0 0.0
        %1768 = vmatpush2.msra.mxu0 0.0
        %1769 = vmatprep.subr.mxu0 0.0
        %1770 = vmatpush2.msra.mxu0 0.0
        %1771 = vmatprep.subr.mxu0 0.0
        %1772 = vmatpush2.msra.mxu0 0.0
        %1773 = vmatprep.subr.mxu0 0.0
        %1774 = vmatpush2.msra.mxu0 0.0
        %1775 = vmatprep.subr.mxu0 0.0
        %1776 = vmatpush2.msra.mxu0 0.0
        %1777 = vmatprep.subr.mxu0 0.0
        %1778 = vmatpush2.msra.mxu0 0.0
        %1779 = vmatprep.subr.mxu0 0.0
        %1780 = vmatpush2.msra.mxu0 0.0
        %1781 = vmatprep.subr.mxu0 0.0
        %1782 = vmatpush2.msra.mxu0 0.0
        %1783 = vmatprep.subr.mxu0 0.0
        %1784 = vmatpush2.msra.mxu0 0.0
        %1785 = vmatprep.subr.mxu0 0.0
        %1786 = vmatpush2.msra.mxu0 0.0
        %1787 = vmatprep.subr.mxu0 0.0
        %1788 = vmatpush2.msra.mxu0 0.0
        %1789 = vmatprep.subr.mxu0 0.0
        %1790 = vmatpush2.msra.mxu0 0.0
        %1791 = vmatprep.subr.mxu0 0.0
        %1792 = vmatpush2.msra.mxu0 0.0
        %1793 = vmatprep.subr.mxu0 0.0
        %1794 = vmatpush2.msra.mxu0 0.0
        %1795 = vmatprep.subr.mxu0 0.0
        %1796 = vmatpush2.msra.mxu0 0.0
        %1797 = vmatprep.mubr.f32.mxu0 0.0
        %1798 = vmatmul.mubr.f32.gmra.mxu0 %v1731
        %v1799 = vpop.f32.mrf.mxu0
        %v1800 = vadd.f32 0.0, %v1799
        %v1801 = vpop.f32.mrf.mxu0
        %v1802 = vadd.f32 0.0, %v1801
        %1803 = vdwg.mxu0
        %v1804 = vadd.f32 %v1690, %v1800
        %v1805 = vadd.f32 %v1692, %v1802
        %v1806 = vld [vmem:[%s881] ss:$8 sm:$0x3]
        %v1808 = vlaneseq
        %v1809 = vshrl.u32 %v1808, 7
        %v1810 = vsub.s32 0, %v1809
        %v1811 = vrot.slane %v1806, %v1810
        %v1812 = vlaneseq
        %v1813 = vshrl.u32 %v1812, 7
        %v1814 = vsub.s32 1, %v1813
        %v1815 = vrot.slane %v1806, %v1814
        %v1818 = vmul.f32 %v1472, %v1811
        %v1819 = vmul.f32 %v1473, %v1815
        %s1820 = scalar_lea.vmem %s8, 24
        %v1821 = vld [vmem:[%s1820] sm:$0xff]
        %v1823 = vsel %vm1532, %v1821, 0
        %1825 = vmatprep.subr.mxu0 0.0
        %1826 = vmatpush1.msra.mxu0 0.0
        %1827 = vmatprep.subr.mxu0 0.0
        %1828 = vmatpush1.msra.mxu0 0.0
        %1829 = vmatprep.subr.mxu0 0.0
        %1830 = vmatpush1.msra.mxu0 0.0
        %1831 = vmatprep.subr.mxu0 0.0
        %1832 = vmatpush1.msra.mxu0 0.0
        %1833 = vmatprep.subr.mxu0 0.0
        %1834 = vmatpush1.msra.mxu0 0.0
        %1835 = vmatprep.subr.mxu0 0.0
        %1836 = vmatpush1.msra.mxu0 0.0
        %1837 = vmatprep.subr.mxu0 0.0
        %1838 = vmatpush1.msra.mxu0 0.0
        %1839 = vmatprep.subr.mxu0 0.0
        %1840 = vmatpush1.msra.mxu0 0.0
        %1841 = vmatprep.subr.mxu0 0.0
        %1842 = vmatpush1.msra.mxu0 0.0
        %1843 = vmatprep.subr.mxu0 0.0
        %1844 = vmatpush1.msra.mxu0 0.0
        %1845 = vmatprep.subr.mxu0 0.0
        %1846 = vmatpush1.msra.mxu0 0.0
        %1847 = vmatprep.subr.mxu0 0.0
        %1848 = vmatpush1.msra.mxu0 0.0
        %1849 = vmatprep.subr.mxu0 0.0
        %1850 = vmatpush1.msra.mxu0 0.0
        %1851 = vmatprep.subr.mxu0 0.0
        %1852 = vmatpush1.msra.mxu0 0.0
        %1853 = vmatprep.subr.mxu0 0.0
        %1854 = vmatpush1.msra.mxu0 0.0
        %1855 = vmatprep.subr.mxu0 %v1819
        %1856 = vmatpush1.msra.mxu0 %v1818
        %1857 = vmatprep.subr.mxu0 0.0
        %1858 = vmatpush2.msra.mxu0 0.0
        %1859 = vmatprep.subr.mxu0 0.0
        %1860 = vmatpush2.msra.mxu0 0.0
        %1861 = vmatprep.subr.mxu0 0.0
        %1862 = vmatpush2.msra.mxu0 0.0
        %1863 = vmatprep.subr.mxu0 0.0
        %1864 = vmatpush2.msra.mxu0 0.0
        %1865 = vmatprep.subr.mxu0 0.0
        %1866 = vmatpush2.msra.mxu0 0.0
        %1867 = vmatprep.subr.mxu0 0.0
        %1868 = vmatpush2.msra.mxu0 0.0
        %1869 = vmatprep.subr.mxu0 0.0
        %1870 = vmatpush2.msra.mxu0 0.0
        %1871 = vmatprep.subr.mxu0 0.0
        %1872 = vmatpush2.msra.mxu0 0.0
        %1873 = vmatprep.subr.mxu0 0.0
        %1874 = vmatpush2.msra.mxu0 0.0
        %1875 = vmatprep.subr.mxu0 0.0
        %1876 = vmatpush2.msra.mxu0 0.0
        %1877 = vmatprep.subr.mxu0 0.0
        %1878 = vmatpush2.msra.mxu0 0.0
        %1879 = vmatprep.subr.mxu0 0.0
        %1880 = vmatpush2.msra.mxu0 0.0
        %1881 = vmatprep.subr.mxu0 0.0
        %1882 = vmatpush2.msra.mxu0 0.0
        %1883 = vmatprep.subr.mxu0 0.0
        %1884 = vmatpush2.msra.mxu0 0.0
        %1885 = vmatprep.subr.mxu0 0.0
        %1886 = vmatpush2.msra.mxu0 0.0
        %1887 = vmatprep.subr.mxu0 0.0
        %1888 = vmatpush2.msra.mxu0 0.0
        %1889 = vmatprep.mubr.f32.mxu0 0.0
        %1890 = vmatmul.mubr.f32.gmra.mxu0 %v1823
        %v1891 = vpop.f32.mrf.mxu0
        %v1892 = vadd.f32 0.0, %v1891
        %v1893 = vpop.f32.mrf.mxu0
        %v1894 = vadd.f32 0.0, %v1893
        %1895 = vdwg.mxu0
        %v1896 = vadd.f32 %v1804, %v1892
        %v1897 = vadd.f32 %v1805, %v1894
        %v1898 = vld [vmem:[%s9] sm:$0xff]
        %v1900 = vcombine.high %v385, %v385
        %v1902 = vsel %vm476, %v1898, 0
        %v1904 = vsel %vm480, %v385, 0
        %v1906 = vsel %vm480, %v1900, 0
        %1908 = vmatprep.subr.mxu0 0.0
        %1909 = vmatpush1.msra.mxu0 0.0
        %1910 = vmatprep.subr.mxu0 0.0
        %1911 = vmatpush1.msra.mxu0 0.0
        %1912 = vmatprep.subr.mxu0 0.0
        %1913 = vmatpush1.msra.mxu0 0.0
        %1914 = vmatprep.subr.mxu0 0.0
        %1915 = vmatpush1.msra.mxu0 0.0
        %1916 = vmatprep.subr.mxu0 0.0
        %1917 = vmatpush1.msra.mxu0 0.0
        %1918 = vmatprep.subr.mxu0 0.0
        %1919 = vmatpush1.msra.mxu0 0.0
        %1920 = vmatprep.subr.mxu0 0.0
        %1921 = vmatpush1.msra.mxu0 0.0
        %1922 = vmatprep.subr.mxu0 0.0
        %1923 = vmatpush1.msra.mxu0 0.0
        %1924 = vmatprep.subr.mxu0 0.0
        %1925 = vmatpush1.msra.mxu0 0.0
        %1926 = vmatprep.subr.mxu0 0.0
        %1927 = vmatpush1.msra.mxu0 0.0
        %1928 = vmatprep.subr.mxu0 0.0
        %1929 = vmatpush1.msra.mxu0 0.0
        %1930 = vmatprep.subr.mxu0 0.0
        %1931 = vmatpush1.msra.mxu0 0.0
        %1932 = vmatprep.subr.mxu0 0.0
        %1933 = vmatpush1.msra.mxu0 0.0
        %1934 = vmatprep.subr.mxu0 0.0
        %1935 = vmatpush1.msra.mxu0 0.0
        %1936 = vmatprep.subr.mxu0 0.0
        %1937 = vmatpush1.msra.mxu0 0.0
        %1938 = vmatprep.subr.mxu0 %v1906
        %1939 = vmatpush1.msra.mxu0 %v1904
        %1940 = vmatprep.subr.mxu0 0.0
        %1941 = vmatpush2.msra.mxu0 0.0
        %1942 = vmatprep.subr.mxu0 0.0
        %1943 = vmatpush2.msra.mxu0 0.0
        %1944 = vmatprep.subr.mxu0 0.0
        %1945 = vmatpush2.msra.mxu0 0.0
        %1946 = vmatprep.subr.mxu0 0.0
        %1947 = vmatpush2.msra.mxu0 0.0
        %1948 = vmatprep.subr.mxu0 0.0
        %1949 = vmatpush2.msra.mxu0 0.0
        %1950 = vmatprep.subr.mxu0 0.0
        %1951 = vmatpush2.msra.mxu0 0.0
        %1952 = vmatprep.subr.mxu0 0.0
        %1953 = vmatpush2.msra.mxu0 0.0
        %1954 = vmatprep.subr.mxu0 0.0
        %1955 = vmatpush2.msra.mxu0 0.0
        %1956 = vmatprep.subr.mxu0 0.0
        %1957 = vmatpush2.msra.mxu0 0.0
        %1958 = vmatprep.subr.mxu0 0.0
        %1959 = vmatpush2.msra.mxu0 0.0
        %1960 = vmatprep.subr.mxu0 0.0
        %1961 = vmatpush2.msra.mxu0 0.0
        %1962 = vmatprep.subr.mxu0 0.0
        %1963 = vmatpush2.msra.mxu0 0.0
        %1964 = vmatprep.subr.mxu0 0.0
        %1965 = vmatpush2.msra.mxu0 0.0
        %1966 = vmatprep.subr.mxu0 0.0
        %1967 = vmatpush2.msra.mxu0 0.0
        %1968 = vmatprep.subr.mxu0 0.0
        %1969 = vmatpush2.msra.mxu0 0.0
        %1970 = vmatprep.subr.mxu0 0.0
        %1971 = vmatpush2.msra.mxu0 0.0
        %1972 = vmatprep.mubr.f32.mxu0 0.0
        %1973 = vmatmul.mubr.f32.gmra.mxu0 %v1902
        %v1974 = vpop.f32.mrf.mxu0
        %v1975 = vadd.f32 0.0, %v1974
        %v1976 = vpop.f32.mrf.mxu0
        %v1977 = vadd.f32 0.0, %v1976
        %1978 = vdwg.mxu0
        %v1979 = vadd.f32 %v1896, %v1975
        %v1980 = vadd.f32 %v1897, %v1977
        %v1981 = vld [vmem:[%s10] sm:$0xff]
        %1983 = vset.pattern.permute.xlu0 0
        %1984 = vperm.xlu0 %1983, %v1981
        %v1985 = vpop.permute.xlu0 %1984
        %v1987 = vadd.f32 %v1979, %v1985
        %v1988 = vadd.f32 %v1980, %v1985
        %s1989 = scalar_lea.vmem %s8, 40
        %v1990 = vld [vmem:[%s1989] sm:$0xff]
        %s1991 = scalar_lea.vmem %s8, 56
        %v1992 = vld [vmem:[%s1991] sm:$0xff]
        %v1994 = vsel %vm1532, %v1992, 0
        %1996 = vmatprep.subr.mxu0 0.0
        %1997 = vmatpush1.msra.mxu0 0.0
        %1998 = vmatprep.subr.mxu0 0.0
        %1999 = vmatpush1.msra.mxu0 0.0
        %2000 = vmatprep.subr.mxu0 0.0
        %2001 = vmatpush1.msra.mxu0 0.0
        %2002 = vmatprep.subr.mxu0 0.0
        %2003 = vmatpush1.msra.mxu0 0.0
        %2004 = vmatprep.subr.mxu0 0.0
        %2005 = vmatpush1.msra.mxu0 0.0
        %2006 = vmatprep.subr.mxu0 0.0
        %2007 = vmatpush1.msra.mxu0 0.0
        %2008 = vmatprep.subr.mxu0 0.0
        %2009 = vmatpush1.msra.mxu0 0.0
        %2010 = vmatprep.subr.mxu0 0.0
        %2011 = vmatpush1.msra.mxu0 0.0
        %2012 = vmatprep.subr.mxu0 0.0
        %2013 = vmatpush1.msra.mxu0 0.0
        %2014 = vmatprep.subr.mxu0 0.0
        %2015 = vmatpush1.msra.mxu0 0.0
        %2016 = vmatprep.subr.mxu0 0.0
        %2017 = vmatpush1.msra.mxu0 0.0
        %2018 = vmatprep.subr.mxu0 0.0
        %2019 = vmatpush1.msra.mxu0 0.0
        %2020 = vmatprep.subr.mxu0 0.0
        %2021 = vmatpush1.msra.mxu0 0.0
        %2022 = vmatprep.subr.mxu0 0.0
        %2023 = vmatpush1.msra.mxu0 0.0
        %2024 = vmatprep.subr.mxu0 0.0
        %2025 = vmatpush1.msra.mxu0 0.0
        %2026 = vmatprep.subr.mxu0 %v1819
        %2027 = vmatpush1.msra.mxu0 %v1818
        %2028 = vmatprep.subr.mxu0 0.0
        %2029 = vmatpush2.msra.mxu0 0.0
        %2030 = vmatprep.subr.mxu0 0.0
        %2031 = vmatpush2.msra.mxu0 0.0
        %2032 = vmatprep.subr.mxu0 0.0
        %2033 = vmatpush2.msra.mxu0 0.0
        %2034 = vmatprep.subr.mxu0 0.0
        %2035 = vmatpush2.msra.mxu0 0.0
        %2036 = vmatprep.subr.mxu0 0.0
        %2037 = vmatpush2.msra.mxu0 0.0
        %2038 = vmatprep.subr.mxu0 0.0
        %2039 = vmatpush2.msra.mxu0 0.0
        %2040 = vmatprep.subr.mxu0 0.0
        %2041 = vmatpush2.msra.mxu0 0.0
        %2042 = vmatprep.subr.mxu0 0.0
        %2043 = vmatpush2.msra.mxu0 0.0
        %2044 = vmatprep.subr.mxu0 0.0
        %2045 = vmatpush2.msra.mxu0 0.0
        %2046 = vmatprep.subr.mxu0 0.0
        %2047 = vmatpush2.msra.mxu0 0.0
        %2048 = vmatprep.subr.mxu0 0.0
        %2049 = vmatpush2.msra.mxu0 0.0
        %2050 = vmatprep.subr.mxu0 0.0
        %2051 = vmatpush2.msra.mxu0 0.0
        %2052 = vmatprep.subr.mxu0 0.0
        %2053 = vmatpush2.msra.mxu0 0.0
        %2054 = vmatprep.subr.mxu0 0.0
        %2055 = vmatpush2.msra.mxu0 0.0
        %2056 = vmatprep.subr.mxu0 0.0
        %2057 = vmatpush2.msra.mxu0 0.0
        %2058 = vmatprep.subr.mxu0 0.0
        %2059 = vmatpush2.msra.mxu0 0.0
        %2060 = vmatprep.mubr.f32.mxu0 0.0
        %2061 = vmatmul.mubr.f32.gmra.mxu0 %v1994
        %v2062 = vpop.f32.mrf.mxu0
        %v2063 = vadd.f32 0.0, %v2062
        %v2064 = vpop.f32.mrf.mxu0
        %v2065 = vadd.f32 0.0, %v2064
        %2066 = vdwg.mxu0
        %v2068 = vsel %vm1532, %v1990, 0
        %2070 = vmatprep.subr.mxu0 0.0
        %2071 = vmatpush1.msra.mxu0 0.0
        %2072 = vmatprep.subr.mxu0 0.0
        %2073 = vmatpush1.msra.mxu0 0.0
        %2074 = vmatprep.subr.mxu0 0.0
        %2075 = vmatpush1.msra.mxu0 0.0
        %2076 = vmatprep.subr.mxu0 0.0
        %2077 = vmatpush1.msra.mxu0 0.0
        %2078 = vmatprep.subr.mxu0 0.0
        %2079 = vmatpush1.msra.mxu0 0.0
        %2080 = vmatprep.subr.mxu0 0.0
        %2081 = vmatpush1.msra.mxu0 0.0
        %2082 = vmatprep.subr.mxu0 0.0
        %2083 = vmatpush1.msra.mxu0 0.0
        %2084 = vmatprep.subr.mxu0 0.0
        %2085 = vmatpush1.msra.mxu0 0.0
        %2086 = vmatprep.subr.mxu0 0.0
        %2087 = vmatpush1.msra.mxu0 0.0
        %2088 = vmatprep.subr.mxu0 0.0
        %2089 = vmatpush1.msra.mxu0 0.0
        %2090 = vmatprep.subr.mxu0 0.0
        %2091 = vmatpush1.msra.mxu0 0.0
        %2092 = vmatprep.subr.mxu0 0.0
        %2093 = vmatpush1.msra.mxu0 0.0
        %2094 = vmatprep.subr.mxu0 0.0
        %2095 = vmatpush1.msra.mxu0 0.0
        %2096 = vmatprep.subr.mxu0 0.0
        %2097 = vmatpush1.msra.mxu0 0.0
        %2098 = vmatprep.subr.mxu0 0.0
        %2099 = vmatpush1.msra.mxu0 0.0
        %2100 = vmatprep.subr.mxu0 %v1529
        %2101 = vmatpush1.msra.mxu0 %v1528
        %2102 = vmatprep.subr.mxu0 0.0
        %2103 = vmatpush2.msra.mxu0 0.0
        %2104 = vmatprep.subr.mxu0 0.0
        %2105 = vmatpush2.msra.mxu0 0.0
        %2106 = vmatprep.subr.mxu0 0.0
        %2107 = vmatpush2.msra.mxu0 0.0
        %2108 = vmatprep.subr.mxu0 0.0
        %2109 = vmatpush2.msra.mxu0 0.0
        %2110 = vmatprep.subr.mxu0 0.0
        %2111 = vmatpush2.msra.mxu0 0.0
        %2112 = vmatprep.subr.mxu0 0.0
        %2113 = vmatpush2.msra.mxu0 0.0
        %2114 = vmatprep.subr.mxu0 0.0
        %2115 = vmatpush2.msra.mxu0 0.0
        %2116 = vmatprep.subr.mxu0 0.0
        %2117 = vmatpush2.msra.mxu0 0.0
        %2118 = vmatprep.subr.mxu0 0.0
        %2119 = vmatpush2.msra.mxu0 0.0
        %2120 = vmatprep.subr.mxu0 0.0
        %2121 = vmatpush2.msra.mxu0 0.0
        %2122 = vmatprep.subr.mxu0 0.0
        %2123 = vmatpush2.msra.mxu0 0.0
        %2124 = vmatprep.subr.mxu0 0.0
        %2125 = vmatpush2.msra.mxu0 0.0
        %2126 = vmatprep.subr.mxu0 0.0
        %2127 = vmatpush2.msra.mxu0 0.0
        %2128 = vmatprep.subr.mxu0 0.0
        %2129 = vmatpush2.msra.mxu0 0.0
        %2130 = vmatprep.subr.mxu0 0.0
        %2131 = vmatpush2.msra.mxu0 0.0
        %2132 = vmatprep.subr.mxu0 0.0
        %2133 = vmatpush2.msra.mxu0 0.0
        %2134 = vmatprep.mubr.f32.mxu0 0.0
        %2135 = vmatmul.mubr.f32.gmra.mxu0 %v2068
        %v2136 = vpop.f32.mrf.mxu0
        %v2137 = vadd.f32 %v2063, %v2136
        %v2138 = vpop.f32.mrf.mxu0
        %v2139 = vadd.f32 %v2065, %v2138
        %2140 = vdwg.mxu0
        %v2141 = vadd.f32 %v2137, %v1985
        %v2142 = vadd.f32 %v2139, %v1985
        %s2143 = scalar_lea.vmem %s8, 80
        %v2144 = vld [vmem:[%s2143] sm:$0xff]
        %s2145 = scalar_lea.vmem %s8, 88
        %v2146 = vld [vmem:[%s2145] sm:$0xff]
        %v2148 = vsel %vm1532, %v2146, 0
        %2150 = vmatprep.subr.mxu0 0.0
        %2151 = vmatpush1.msra.mxu0 0.0
        %2152 = vmatprep.subr.mxu0 0.0
        %2153 = vmatpush1.msra.mxu0 0.0
        %2154 = vmatprep.subr.mxu0 0.0
        %2155 = vmatpush1.msra.mxu0 0.0
        %2156 = vmatprep.subr.mxu0 0.0
        %2157 = vmatpush1.msra.mxu0 0.0
        %2158 = vmatprep.subr.mxu0 0.0
        %2159 = vmatpush1.msra.mxu0 0.0
        %2160 = vmatprep.subr.mxu0 0.0
        %2161 = vmatpush1.msra.mxu0 0.0
        %2162 = vmatprep.subr.mxu0 0.0
        %2163 = vmatpush1.msra.mxu0 0.0
        %2164 = vmatprep.subr.mxu0 0.0
        %2165 = vmatpush1.msra.mxu0 0.0
        %2166 = vmatprep.subr.mxu0 0.0
        %2167 = vmatpush1.msra.mxu0 0.0
        %2168 = vmatprep.subr.mxu0 0.0
        %2169 = vmatpush1.msra.mxu0 0.0
        %2170 = vmatprep.subr.mxu0 0.0
        %2171 = vmatpush1.msra.mxu0 0.0
        %2172 = vmatprep.subr.mxu0 0.0
        %2173 = vmatpush1.msra.mxu0 0.0
        %2174 = vmatprep.subr.mxu0 0.0
        %2175 = vmatpush1.msra.mxu0 0.0
        %2176 = vmatprep.subr.mxu0 0.0
        %2177 = vmatpush1.msra.mxu0 0.0
        %2178 = vmatprep.subr.mxu0 0.0
        %2179 = vmatpush1.msra.mxu0 0.0
        %2180 = vmatprep.subr.mxu0 %v1819
        %2181 = vmatpush1.msra.mxu0 %v1818
        %2182 = vmatprep.subr.mxu0 0.0
        %2183 = vmatpush2.msra.mxu0 0.0
        %2184 = vmatprep.subr.mxu0 0.0
        %2185 = vmatpush2.msra.mxu0 0.0
        %2186 = vmatprep.subr.mxu0 0.0
        %2187 = vmatpush2.msra.mxu0 0.0
        %2188 = vmatprep.subr.mxu0 0.0
        %2189 = vmatpush2.msra.mxu0 0.0
        %2190 = vmatprep.subr.mxu0 0.0
        %2191 = vmatpush2.msra.mxu0 0.0
        %2192 = vmatprep.subr.mxu0 0.0
        %2193 = vmatpush2.msra.mxu0 0.0
        %2194 = vmatprep.subr.mxu0 0.0
        %2195 = vmatpush2.msra.mxu0 0.0
        %2196 = vmatprep.subr.mxu0 0.0
        %2197 = vmatpush2.msra.mxu0 0.0
        %2198 = vmatprep.subr.mxu0 0.0
        %2199 = vmatpush2.msra.mxu0 0.0
        %2200 = vmatprep.subr.mxu0 0.0
        %2201 = vmatpush2.msra.mxu0 0.0
        %2202 = vmatprep.subr.mxu0 0.0
        %2203 = vmatpush2.msra.mxu0 0.0
        %2204 = vmatprep.subr.mxu0 0.0
        %2205 = vmatpush2.msra.mxu0 0.0
        %2206 = vmatprep.subr.mxu0 0.0
        %2207 = vmatpush2.msra.mxu0 0.0
        %2208 = vmatprep.subr.mxu0 0.0
        %2209 = vmatpush2.msra.mxu0 0.0
        %2210 = vmatprep.subr.mxu0 0.0
        %2211 = vmatpush2.msra.mxu0 0.0
        %2212 = vmatprep.subr.mxu0 0.0
        %2213 = vmatpush2.msra.mxu0 0.0
        %2214 = vmatprep.mubr.f32.mxu0 0.0
        %2215 = vmatmul.mubr.f32.gmra.mxu0 %v2148
        %v2216 = vpop.f32.mrf.mxu0
        %v2217 = vadd.f32 0.0, %v2216
        %v2218 = vpop.f32.mrf.mxu0
        %v2219 = vadd.f32 0.0, %v2218
        %2220 = vdwg.mxu0
        %v2222 = vsel %vm1532, %v2144, 0
        %2224 = vmatprep.subr.mxu0 0.0
        %2225 = vmatpush1.msra.mxu0 0.0
        %2226 = vmatprep.subr.mxu0 0.0
        %2227 = vmatpush1.msra.mxu0 0.0
        %2228 = vmatprep.subr.mxu0 0.0
        %2229 = vmatpush1.msra.mxu0 0.0
        %2230 = vmatprep.subr.mxu0 0.0
        %2231 = vmatpush1.msra.mxu0 0.0
        %2232 = vmatprep.subr.mxu0 0.0
        %2233 = vmatpush1.msra.mxu0 0.0
        %2234 = vmatprep.subr.mxu0 0.0
        %2235 = vmatpush1.msra.mxu0 0.0
        %2236 = vmatprep.subr.mxu0 0.0
        %2237 = vmatpush1.msra.mxu0 0.0
        %2238 = vmatprep.subr.mxu0 0.0
        %2239 = vmatpush1.msra.mxu0 0.0
        %2240 = vmatprep.subr.mxu0 0.0
        %2241 = vmatpush1.msra.mxu0 0.0
        %2242 = vmatprep.subr.mxu0 0.0
        %2243 = vmatpush1.msra.mxu0 0.0
        %2244 = vmatprep.subr.mxu0 0.0
        %2245 = vmatpush1.msra.mxu0 0.0
        %2246 = vmatprep.subr.mxu0 0.0
        %2247 = vmatpush1.msra.mxu0 0.0
        %2248 = vmatprep.subr.mxu0 0.0
        %2249 = vmatpush1.msra.mxu0 0.0
        %2250 = vmatprep.subr.mxu0 0.0
        %2251 = vmatpush1.msra.mxu0 0.0
        %2252 = vmatprep.subr.mxu0 0.0
        %2253 = vmatpush1.msra.mxu0 0.0
        %2254 = vmatprep.subr.mxu0 %v1727
        %2255 = vmatpush1.msra.mxu0 %v1726
        %2256 = vmatprep.subr.mxu0 0.0
        %2257 = vmatpush2.msra.mxu0 0.0
        %2258 = vmatprep.subr.mxu0 0.0
        %2259 = vmatpush2.msra.mxu0 0.0
        %2260 = vmatprep.subr.mxu0 0.0
        %2261 = vmatpush2.msra.mxu0 0.0
        %2262 = vmatprep.subr.mxu0 0.0
        %2263 = vmatpush2.msra.mxu0 0.0
        %2264 = vmatprep.subr.mxu0 0.0
        %2265 = vmatpush2.msra.mxu0 0.0
        %2266 = vmatprep.subr.mxu0 0.0
        %2267 = vmatpush2.msra.mxu0 0.0
        %2268 = vmatprep.subr.mxu0 0.0
        %2269 = vmatpush2.msra.mxu0 0.0
        %2270 = vmatprep.subr.mxu0 0.0
        %2271 = vmatpush2.msra.mxu0 0.0
        %2272 = vmatprep.subr.mxu0 0.0
        %2273 = vmatpush2.msra.mxu0 0.0
        %2274 = vmatprep.subr.mxu0 0.0
        %2275 = vmatpush2.msra.mxu0 0.0
        %2276 = vmatprep.subr.mxu0 0.0
        %2277 = vmatpush2.msra.mxu0 0.0
        %2278 = vmatprep.subr.mxu0 0.0
        %2279 = vmatpush2.msra.mxu0 0.0
        %2280 = vmatprep.subr.mxu0 0.0
        %2281 = vmatpush2.msra.mxu0 0.0
        %2282 = vmatprep.subr.mxu0 0.0
        %2283 = vmatpush2.msra.mxu0 0.0
        %2284 = vmatprep.subr.mxu0 0.0
        %2285 = vmatpush2.msra.mxu0 0.0
        %2286 = vmatprep.subr.mxu0 0.0
        %2287 = vmatpush2.msra.mxu0 0.0
        %2288 = vmatprep.mubr.f32.mxu0 0.0
        %2289 = vmatmul.mubr.f32.gmra.mxu0 %v2222
        %v2290 = vpop.f32.mrf.mxu0
        %v2291 = vadd.f32 %v2217, %v2290
        %v2292 = vpop.f32.mrf.mxu0
        %v2293 = vadd.f32 %v2219, %v2292
        %2294 = vdwg.mxu0
        %v2295 = vadd.f32 %v2291, %v1985
        %v2296 = vadd.f32 %v2293, %v1985
        %s2297 = scalar_lea.vmem %s8, 120
        %v2298 = vld [vmem:[%s2297] sm:$0xff]
        %v2300 = vsel %vm1532, %v2298, 0
        %2302 = vmatprep.subr.mxu0 0.0
        %2303 = vmatpush1.msra.mxu0 0.0
        %2304 = vmatprep.subr.mxu0 0.0
        %2305 = vmatpush1.msra.mxu0 0.0
        %2306 = vmatprep.subr.mxu0 0.0
        %2307 = vmatpush1.msra.mxu0 0.0
        %2308 = vmatprep.subr.mxu0 0.0
        %2309 = vmatpush1.msra.mxu0 0.0
        %2310 = vmatprep.subr.mxu0 0.0
        %2311 = vmatpush1.msra.mxu0 0.0
        %2312 = vmatprep.subr.mxu0 0.0
        %2313 = vmatpush1.msra.mxu0 0.0
        %2314 = vmatprep.subr.mxu0 0.0
        %2315 = vmatpush1.msra.mxu0 0.0
        %2316 = vmatprep.subr.mxu0 0.0
        %2317 = vmatpush1.msra.mxu0 0.0
        %2318 = vmatprep.subr.mxu0 0.0
        %2319 = vmatpush1.msra.mxu0 0.0
        %2320 = vmatprep.subr.mxu0 0.0
        %2321 = vmatpush1.msra.mxu0 0.0
        %2322 = vmatprep.subr.mxu0 0.0
        %2323 = vmatpush1.msra.mxu0 0.0
        %2324 = vmatprep.subr.mxu0 0.0
        %2325 = vmatpush1.msra.mxu0 0.0
        %2326 = vmatprep.subr.mxu0 0.0
        %2327 = vmatpush1.msra.mxu0 0.0
        %2328 = vmatprep.subr.mxu0 0.0
        %2329 = vmatpush1.msra.mxu0 0.0
        %2330 = vmatprep.subr.mxu0 0.0
        %2331 = vmatpush1.msra.mxu0 0.0
        %2332 = vmatprep.subr.mxu0 %v1819
        %2333 = vmatpush1.msra.mxu0 %v1818
        %2334 = vmatprep.subr.mxu0 0.0
        %2335 = vmatpush2.msra.mxu0 0.0
        %2336 = vmatprep.subr.mxu0 0.0
        %2337 = vmatpush2.msra.mxu0 0.0
        %2338 = vmatprep.subr.mxu0 0.0
        %2339 = vmatpush2.msra.mxu0 0.0
        %2340 = vmatprep.subr.mxu0 0.0
        %2341 = vmatpush2.msra.mxu0 0.0
        %2342 = vmatprep.subr.mxu0 0.0
        %2343 = vmatpush2.msra.mxu0 0.0
        %2344 = vmatprep.subr.mxu0 0.0
        %2345 = vmatpush2.msra.mxu0 0.0
        %2346 = vmatprep.subr.mxu0 0.0
        %2347 = vmatpush2.msra.mxu0 0.0
        %2348 = vmatprep.subr.mxu0 0.0
        %2349 = vmatpush2.msra.mxu0 0.0
        %2350 = vmatprep.subr.mxu0 0.0
        %2351 = vmatpush2.msra.mxu0 0.0
        %2352 = vmatprep.subr.mxu0 0.0
        %2353 = vmatpush2.msra.mxu0 0.0
        %2354 = vmatprep.subr.mxu0 0.0
        %2355 = vmatpush2.msra.mxu0 0.0
        %2356 = vmatprep.subr.mxu0 0.0
        %2357 = vmatpush2.msra.mxu0 0.0
        %2358 = vmatprep.subr.mxu0 0.0
        %2359 = vmatpush2.msra.mxu0 0.0
        %2360 = vmatprep.subr.mxu0 0.0
        %2361 = vmatpush2.msra.mxu0 0.0
        %2362 = vmatprep.subr.mxu0 0.0
        %2363 = vmatpush2.msra.mxu0 0.0
        %2364 = vmatprep.subr.mxu0 0.0
        %2365 = vmatpush2.msra.mxu0 0.0
        %2366 = vmatprep.mubr.f32.mxu0 0.0
        %2367 = vmatmul.mubr.f32.gmra.mxu0 %v2300
        %v2368 = vpop.f32.mrf.mxu0
        %v2369 = vadd.f32 %v1985, %v2368
        %v2370 = vpop.f32.mrf.mxu0
        %v2371 = vadd.f32 %v1985, %v2370
        %2372 = vdwg.mxu0
        %2373 = vst [vmem:[%s379] sm:$0xff] %v1987
        %2374 = vst [vmem:[%s379 + $0x8] sm:$0xff] %v1988
        %2375 = vst [vmem:[%s379 + $0x10] sm:$0xff] %v2141
        %2376 = vst [vmem:[%s379 + $0x18] sm:$0xff] %v2142
        %2377 = vst [vmem:[%s379 + $0x20] sm:$0xff] %v2295
        %2378 = vst [vmem:[%s379 + $0x28] sm:$0xff] %v2296
        %2379 = vst [vmem:[%s379 + $0x30] sm:$0xff] %v2369
        %2380 = vst [vmem:[%s379 + $0x38] sm:$0xff] %v2371
        %s2381 = sand.u32 %s269, 1
        %s2382 = scalar_lea.sflag [#allocation5], %s2381
        %s2383 = sand.u32 %s269, 1
        %s2384 = smul.addr %s2383, 64
        %s2385 = scalar_lea.vmem [#allocation4], %s2384
        // Predicated region
        $region65: #{tpu_custom_call.1} parent=63 // pred_check
          %p2386 = pneg %p279
        $region66: #{tpu_custom_call.1} parent=63 // pred_check_branch
          %2388 = sbr.rel (%p2386) target = $region68
        $region67: #{tpu_custom_call.1} parent=63 // pred_region
          %s2390 = ssub.s32 1024, 1024
          %2391 = vsyncadd %s2382, %s2390
          %s2392 = smul.addr %s25, 8
          %s2393 = smul.addr %s2392, 128
          %s2394 = scalar_lea.hbm %s11, %s2393
          %s2395 = sshll.u32 %s2385, 4
          %s2396 = int_to_ptr.vmem [resolvable:$true] %s2395
          %2401 = dma.vmem_to_hbm [thread:$0]  %s2396, 1024, %s2394, %s2382, 256, 256, 16
        $region68: #{tpu_custom_call.1} parent=63 // pred_fallthru
          _
      $region64: #{tpu_custom_call.1} parent=5 // pred_fallthru
        _
      %p2402 = scmp.le.s32.totalorder 2, %s20
      // Predicated region
      $region69: #{tpu_custom_call.1} parent=5 // pred_check
        %p2403 = pneg %p2402
      $region70: #{tpu_custom_call.1} parent=5 // pred_check_branch
        %2405 = sbr.rel (%p2403) target = $region72
      $region71: #{tpu_custom_call.1} parent=5 // pred_region
        %s2406 = ssub.s32 %s20, 2
        // Predicated region
        $region73: #{tpu_custom_call.1} parent=71 // pred_check
          %p2407 = pneg %p285
        $region74: #{tpu_custom_call.1} parent=71 // pred_check_branch
          %2409 = sbr.rel (%p2407) target = $region76
        $region75: #{tpu_custom_call.1} parent=71 // pred_region
          %s2410 = sand.u32 %s270, 1
          %s2411 = scalar_lea.sflag [#allocation5], %s2410
          %s2412 = sand.u32 %s270, 1
          %s2413 = smul.addr %s2412, 64
          %s2414 = scalar_lea.vmem [#allocation4], %s2413
          %2415 = dma.done %s2411, 1024
        $region76: #{tpu_custom_call.1} parent=71 // pred_fallthru
          _
      $region72: #{tpu_custom_call.1} parent=5 // pred_fallthru
        _
    $region6: #{tpu_custom_call.1} parent=1 // loop_footer
      %s24 = sadd.s32 1, %s20
    $region7: #{tpu_custom_call.1} parent=1 // loop_footer_branch
      %19 = sbr.rel target = $region3
    $region8: #{tpu_custom_call.1} parent=1 // loop_exit
      _
    %2416 = vsyncpa [#allocation5], 1
    %s2417 = scalar_lea.sflag [#allocation5], 1
    %2418 = vsyncpa %s2417, 1

</llo_original>
